<compile_context>
chip_gen: v6e
topology: v6e:2x2x1
jax: 0.10.0
libtpu: 0.0.40
codegen_flags: <defaults>
</compile_context>

<pallas_src>
import jax
import jax.numpy as jnp
from jax.experimental import pallas as pl
from jax.experimental.pallas import tpu as pltpu

_SELU_ALPHA = 1.6732632423543772
_SELU_SCALE = 1.0507009873554805
_VMEM_LIMIT_BYTES = 48 * 1024 * 1024  # explicit: < v7x 64 MiB physical, << v5e/v6e 128 MiB


# ---------------------------------------------------------------------------
# small helpers (shared by kernels and the pure-JAX reference)
# ---------------------------------------------------------------------------
def _round_up(x, m):
    return ((x + m - 1) // m) * m


def _dim_and_tile(dim, tile, align):
    """Return (padded_dim, tile), both multiples of `align`."""
    tile = max(align, (tile // align) * align)
    if dim <= tile:
        padded = _round_up(dim, align)
        return padded, padded
    return _round_up(dim, tile), tile


def _pad2d(x, rows, cols):
    r, c = x.shape
    if r == rows and c == cols:
        return x
    return jnp.pad(x, ((0, rows - r), (0, cols - c)))


def _sigmoid(x):
    return 1.0 / (1.0 + jnp.exp(-x))


def _elu(x):
    return jnp.where(x > 0.0, x, jnp.exp(jnp.minimum(x, 0.0)) - 1.0)


def _selu(x):
    return _SELU_SCALE * jnp.where(
        x > 0.0, x, _SELU_ALPHA * (jnp.exp(jnp.minimum(x, 0.0)) - 1.0))


# ---------------------------------------------------------------------------
# generic tiled fused matmul:  out = act(pre(a) @ b + bias) [+ residual]
# ---------------------------------------------------------------------------
def _make_matmul_kernel(has_bias, has_res, pre_act, act):
    def kernel(*refs):
        a_ref, b_ref = refs[0], refs[1]
        idx = 2
        bias_ref = None
        res_ref = None
        if has_bias:
            bias_ref = refs[idx]
            idx += 1
        if has_res:
            res_ref = refs[idx]
            idx += 1
        o_ref, acc_ref = refs[idx], refs[idx + 1]

        k = pl.program_id(2)

        @pl.when(k == 0)
        def _init():
            acc_ref[...] = jnp.zeros_like(acc_ref)

        a = a_ref[...]
        if pre_act == "sigmoid":
            a = _sigmoid(a.astype(jnp.float32)).astype(a_ref.dtype)
        acc_ref[...] += jnp.dot(a, b_ref[...], preferred_element_type=jnp.float32)

        @pl.when(k == pl.num_programs(2) - 1)
        def _epilogue():
            out = acc_ref[...]
            if has_bias:
                out = out + bias_ref[...]
            if act == "relu":
                out = jnp.maximum(out, 0.0)
            elif act == "elu":
                out = _elu(out)
            elif act == "selu":
                out = _selu(out)
            if has_res:
                out = out + res_ref[...]
            o_ref[...] = out.astype(o_ref.dtype)

    return kernel


def matmul_fused(a, b, bias=None, residual=None, *, pre_act=None, act=None,
                 tm=128, tn=128, tk=128, compute_dtype=jnp.float32):
    """Tiled TPU matmul with fused epilogue.

    a: (M, K), b: (K, N), bias: (1, N) or None, residual: (M, N) or None.
    pre_act in {None,'sigmoid'} (applied to `a` in-kernel); act in
    {None,'relu','elu','selu'} applied in the last-K epilogue, before the residual.
    Operands are cast to `compute_dtype` (f32 or bf16); accumulation is always f32.
    Inputs are zero-padded to lane/sublane-aligned tiles; padding is sliced off.
    """
    m, k_dim = a.shape
    k2, n = b.shape
    assert k_dim == k2, (a.shape, b.shape)

    mp, tm = _dim_and_tile(m, tm, 8)
    np_, tn = _dim_and_tile(n, tn, 128)
    kp, tk = _dim_and_tile(k_dim, tk, 128)

    operands = [_pad2d(a, mp, kp).astype(compute_dtype),
                _pad2d(b, kp, np_).astype(compute_dtype)]
    in_specs = [pl.BlockSpec((tm, tk), lambda i, j, kk: (i, kk)),
                pl.BlockSpec((tk, tn), lambda i, j, kk: (kk, j))]
    if bias is not None:
        operands.append(_pad2d(bias.astype(jnp.float32), 1, np_))
        in_specs.append(pl.BlockSpec((1, tn), lambda i, j, kk: (0, j)))
    if residual is not None:
        operands.append(_pad2d(residual.astype(jnp.float32), mp, np_))
        in_specs.append(pl.BlockSpec((tm, tn), lambda i, j, kk: (i, j)))

    kernel = _make_matmul_kernel(bias is not None, residual is not None, pre_act, act)
    cost = pl.CostEstimate(
        flops=2 * mp * np_ * kp,
        transcendentals=mp * np_ if (act in ("elu", "selu") or pre_act) else 0,
        bytes_accessed=sum(int(o.size) * o.dtype.itemsize for o in operands) + 4 * mp * np_)

    out = pl.pallas_call(
        kernel,
        out_shape=jax.ShapeDtypeStruct((mp, np_), jnp.float32),
        grid=(mp // tm, np_ // tn, kp // tk),
        in_specs=in_specs,
        out_specs=pl.BlockSpec((tm, tn), lambda i, j, kk: (i, j)),
        scratch_shapes=[pltpu.VMEM((tm, tn), jnp.float32)],
        compiler_params=pltpu.CompilerParams(
            dimension_semantics=("parallel", "parallel", "arbitrary"),
            vmem_limit_bytes=_VMEM_LIMIT_BYTES),
        cost_estimate=cost,
    )(*operands)

    if mp != m or np_ != n:
        out = out[:m, :n]
    return out


# ---------------------------------------------------------------------------
# GCN layer / LabelNet
# ---------------------------------------------------------------------------
def gcn_layer(adj, x, w, b, *, act=None, residual=None, compute_dtype=jnp.float32):
    """GCNLayer: DGL copy_src+sum aggregation followed by nn.Linear.

    adj[dst, src] = 1 iff edge src->dst, so aggregation is A @ X.  The Linear weight
    is pre-transposed to (in_feats, out_feats).  Association is shape-dependent:
    (A @ X) @ W when out_feats >= in_feats, else A @ (X @ W) (fewer MXU flops).
    Bias, optional activation and optional residual are fused into the last matmul.
    """
    in_feats, out_feats = w.shape
    if out_feats >= in_feats:
        h = matmul_fused(adj, x, compute_dtype=compute_dtype)
        return matmul_fused(h, w, bias=b, act=act, residual=residual,
                            compute_dtype=compute_dtype)
    xw = matmul_fused(x, w, compute_dtype=compute_dtype)
    return matmul_fused(adj, xw, bias=b, act=act, residual=residual,
                        compute_dtype=compute_dtype)


# ---------------------------------------------------------------------------
# dilated Conv1d + SELU  (im2col in the wrapper, matmul+bias+SELU in the kernel)
# ---------------------------------------------------------------------------
def dilated_conv1d_selu(x, w, bias, *, dilation, compute_dtype=jnp.float32):
    """x: (B, L, E_in) channels-last, w: (E_out, E_in, ksz) torch layout, bias: (E_out,)."""
    b_sz, l_in, e_in = x.shape
    e_out, e_in2, ksz = w.shape
    assert e_in == e_in2
    l_out = l_in - dilation * (ksz - 1)
    # im2col window gather is layout plumbing only; the conv is one fused Pallas matmul.
    cols = jnp.concatenate(
        [x[:, k * dilation:k * dilation + l_out, :] for k in range(ksz)], axis=-1)
    w_mat = jnp.transpose(w, (2, 1, 0)).reshape(ksz * e_in, e_out)
    y = matmul_fused(cols.reshape(b_sz * l_out, ksz * e_in), w_mat,
                     bias=bias[None, :], act="selu", compute_dtype=compute_dtype)
    return y.reshape(b_sz, l_out, e_out)


# ---------------------------------------------------------------------------
# label attention pooling
# ---------------------------------------------------------------------------
def _label_attention_kernel(conv_ref, label_t_ref, o_ref):
    # conv_ref: (1, L, E) one batch element; label_t_ref: (E, N); o_ref: (1, 1, N)
    conv = conv_ref[0]                                                        # (L, E)
    scores = jnp.dot(conv, label_t_ref[...],
                     preferred_element_type=jnp.float32)                      # (L, N)
    m = jnp.max(scores, axis=0, keepdims=True)
    p = jnp.exp(scores - m)                                                   # softmax over time
    denom = jnp.sum(p, axis=0, keepdims=True)
    # sum_e (conv @ atten)[e,n] * label[n,e]  ==  sum_t atten[t,n] * scores[t,n]
    pooled = jnp.sum(p * scores, axis=0, keepdims=True) / denom               # (1, N)
    o_ref[...] = pooled[None, :, :]


def label_attention_pool(conv, label_feature):
    """conv: (B, L, E) channels-last conv activations; label_feature: (N, E) -> (B, N)."""
    b_sz, l_len, e_dim = conv.shape
    n_lbl, e2 = label_feature.shape
    assert e_dim == e2
    label_t = label_feature.T  # (E, N): wrapper-side layout plumbing
    out = pl.pallas_call(
        _label_attention_kernel,
        out_shape=jax.ShapeDtypeStruct((b_sz, 1, n_lbl), jnp.float32),
        grid=(b_sz,),
        in_specs=[pl.BlockSpec((1, l_len, e_dim), lambda b: (b, 0, 0)),
                  pl.BlockSpec((e_dim, n_lbl), lambda b: (0, 0))],
        out_specs=pl.BlockSpec((1, 1, n_lbl), lambda b: (b, 0, 0)),
        compiler_params=pltpu.CompilerParams(
            dimension_semantics=("parallel",),
            vmem_limit_bytes=_VMEM_LIMIT_BYTES),
    )(conv, label_t)
    return out[:, 0, :]


# ---------------------------------------------------------------------------
# CorNet block
# ---------------------------------------------------------------------------
def cornet_block(logits, w1t, b1, w2t, b2, *, compute_dtype=jnp.float32):
    """ctx = elu(sigmoid(logits) @ W1^T + b1); out = ctx @ W2^T + b2 + logits."""
    ctx = matmul_fused(logits, w1t, bias=b1, pre_act="sigmoid", act="elu",
                       compute_dtype=compute_dtype)
    return matmul_fused(ctx, w2t, bias=b2, residual=logits,
                        compute_dtype=compute_dtype)


# ---------------------------------------------------------------------------
# full forward
# ---------------------------------------------------------------------------
def multichannel_gcn_forward(params, tokens, adj, node_feat, *,
                             compute_dtype=jnp.float32):
    # --- LabelNet: gcn1 -> relu -> gcn2, + node-feature residual (fused epilogues) ---
    h = gcn_layer(adj, node_feat, params["gcn1_w"], params["gcn1_b"],
                  act="relu", compute_dtype=compute_dtype)
    label_feature = gcn_layer(adj, h, params["gcn2_w"], params["gcn2_b"],
                              residual=node_feat, compute_dtype=compute_dtype)

    # --- abstract branch ---
    # TODO(synk): embedding gather stays in plain JAX (jnp.take); a Pallas gather via
    # scalar-prefetch DMA is possible but unnecessary at these sizes.
    x = jnp.take(params["emb"], tokens, axis=0)          # (B, L, E) channels-last
    for li, dil in enumerate((1, 2, 3)):
        x = dilated_conv1d_selu(x, params[f"conv{li}_w"], params[f"conv{li}_b"],
                                dilation=dil, compute_dtype=compute_dtype)
        # nn.AlphaDropout(p=0.05): identity at inference time.

    # --- label attention pooling ---
    x_feature = label_attention_pool(x, label_feature)   # (B, N)

    # --- CorNet ---
    for j in range(params["n_cornet_blocks"]):
        x_feature = cornet_block(x_feature, params[f"cor{j}_w1t"], params[f"cor{j}_b1"],
                                 params[f"cor{j}_w2t"], params[f"cor{j}_b2"],
                                 compute_dtype=compute_dtype)
    return x_feature


# ---------------------------------------------------------------------------
# pure-JAX reference (mirrors the PyTorch forward, un-fused)
# ---------------------------------------------------------------------------
def reference_forward(params, tokens, adj, node_feat):
    h = jnp.maximum((adj @ node_feat) @ params["gcn1_w"] + params["gcn1_b"], 0.0)
    lf = (adj @ h) @ params["gcn2_w"] + params["gcn2_b"]
    label_feature = lf + node_feat

    x = params["emb"][tokens]                            # (B, L, E)
    for li, dil in enumerate((1, 2, 3)):
        w = params[f"conv{li}_w"]
        b = params[f"conv{li}_b"]
        ksz = w.shape[-1]
        l_out = x.shape[1] - dil * (ksz - 1)
        acc = jnp.zeros((x.shape[0], l_out, w.shape[0]), jnp.float32) + b[None, None, :]
        for k in range(ksz):
            acc = acc + jnp.einsum("ble,oe->blo",
                                   x[:, k * dil:k * dil + l_out, :], w[:, :, k])
        x = _selu(acc)

    scores = jnp.einsum("ble,ne->bln", x, label_feature)          # (B, L3, N)
    m = jnp.max(scores, axis=1, keepdims=True)
    p = jnp.exp(scores - m)
    atten = p / jnp.sum(p, axis=1, keepdims=True)
    abstract_feature = jnp.einsum("ble,bln->bne", x, atten)       # (B, N, E)
    x_feature = jnp.sum(abstract_feature * label_feature[None, :, :], axis=2)

    for j in range(params["n_cornet_blocks"]):
        identity = x_feature
        ctx = _elu(_sigmoid(x_feature) @ params[f"cor{j}_w1t"] + params[f"cor{j}_b1"])
        x_feature = ctx @ params[f"cor{j}_w2t"] + params[f"cor{j}_b2"] + identity
    return x_feature


# ---------------------------------------------------------------------------
# deterministic parameters / example inputs
# ---------------------------------------------------------------------------
def init_params(key, *, vocab_size, embed_dim, n_labels, ksz, cornet_dim,
                n_cornet_blocks):
    keys = iter(jax.random.split(key, 32))
    p = {"n_cornet_blocks": n_cornet_blocks}
    p["emb"] = 0.3 * jax.random.normal(next(keys), (vocab_size, embed_dim),
                                       dtype=jnp.float32)
    cbound = 1.0 / (embed_dim * ksz) ** 0.5
    for li in range(3):
        p[f"conv{li}_w"] = jax.random.uniform(next(keys), (embed_dim, embed_dim, ksz),
                                              minval=-cbound, maxval=cbound,
                                              dtype=jnp.float32)
        p[f"conv{li}_b"] = jax.random.uniform(next(keys), (embed_dim,),
                                              minval=-cbound, maxval=cbound,
                                              dtype=jnp.float32)
    gbound = 1.0 / embed_dim ** 0.5
    for name in ("gcn1", "gcn2"):
        p[f"{name}_w"] = jax.random.uniform(next(keys), (embed_dim, embed_dim),
                                            minval=-gbound, maxval=gbound,
                                            dtype=jnp.float32)  # pre-transposed (in, out)
        p[f"{name}_b"] = jax.random.uniform(next(keys), (1, embed_dim),
                                            minval=-gbound, maxval=gbound,
                                            dtype=jnp.float32)
    xb = (6.0 / (n_labels + cornet_dim)) ** 0.5                  # xavier_uniform
    for j in range(n_cornet_blocks):
        p[f"cor{j}_w1t"] = jax.random.uniform(next(keys), (n_labels, cornet_dim),
                                              minval=-xb, maxval=xb, dtype=jnp.float32)
        p[f"cor{j}_b1"] = jax.random.uniform(next(keys), (1, cornet_dim),
                                             minval=-1.0 / n_labels ** 0.5,
                                             maxval=1.0 / n_labels ** 0.5,
                                             dtype=jnp.float32)
        p[f"cor{j}_w2t"] = jax.random.uniform(next(keys), (cornet_dim, n_labels),
                                              minval=-xb, maxval=xb, dtype=jnp.float32)
        p[f"cor{j}_b2"] = jax.random.uniform(next(keys), (1, n_labels),
                                             minval=-1.0 / cornet_dim ** 0.5,
                                             maxval=1.0 / cornet_dim ** 0.5,
                                             dtype=jnp.float32)
    return p


if __name__ == "__main__":
    jax.config.update("jax_default_matmul_precision", "highest")

    VOCAB, EMBED, N_LABELS = 512, 128, 256          # lane-dense feature/label dims
    BATCH, SEQ, KSZ = 8, 44, 3                      # SEQ - 2*(1+2+3) = 32 after the conv stack
    CORNET_DIM, N_CORNET_BLOCKS = 128, 2

    root = jax.random.PRNGKey(0)
    k_par, k_tok, k_adj, k_feat = jax.random.split(root, 4)

    params = init_params(k_par, vocab_size=VOCAB, embed_dim=EMBED, n_labels=N_LABELS,
                         ksz=KSZ, cornet_dim=CORNET_DIM,
                         n_cornet_blocks=N_CORNET_BLOCKS)
    tokens = jax.random.randint(k_tok, (BATCH, SEQ), 0, VOCAB, dtype=jnp.int32)
    adj = jax.random.bernoulli(k_adj, 0.1, (N_LABELS, N_LABELS)).astype(jnp.float32)
    node_feat = 0.1 * jax.random.normal(k_feat, (N_LABELS, EMBED), dtype=jnp.float32)

    # full forward, f32 operands + f32 accumulation
    out = multichannel_gcn_forward(params, tokens, adj, node_feat)
    out = jax.block_until_ready(out)
    assert out.shape == (BATCH, N_LABELS), out.shape

    ref = reference_forward(params, tokens, adj, node_feat)
    assert jnp.allclose(out, ref, atol=2e-2, rtol=2e-2), (
        f"max abs err {float(jnp.max(jnp.abs(out - ref)))}")

    # bf16-MXU path for the GCN/LabelNet branch (v6e/v7x feedback): bf16 operands,
    # f32 accumulation, checked against a reference that applies the same casts.
    h16 = gcn_layer(adj, node_feat, params["gcn1_w"], params["gcn1_b"], act="relu",
                    compute_dtype=jnp.bfloat16)
    lf16 = gcn_layer(adj, h16, params["gcn2_w"], params["gcn2_b"], residual=node_feat,
                     compute_dtype=jnp.bfloat16)
    lf16 = jax.block_until_ready(lf16)

    def _gcn_bf16_ref(a, x, w, b):
        c = lambda t: t.astype(jnp.bfloat16)
        agg = jnp.dot(c(a), c(x), preferred_element_type=jnp.float32)
        return jnp.dot(c(agg), c(w), preferred_element_type=jnp.float32) + b

    h_ref = jnp.maximum(
        _gcn_bf16_ref(adj, node_feat, params["gcn1_w"], params["gcn1_b"]), 0.0)
    lf_ref = _gcn_bf16_ref(adj, h_ref, params["gcn2_w"], params["gcn2_b"]) + node_feat
    assert jnp.allclose(lf16, lf_ref, atol=5e-2, rtol=5e-2), (
        f"bf16 max abs err {float(jnp.max(jnp.abs(lf16 - lf_ref)))}")

    print("KERNEL_OK")
</pallas_src>

<mosaic_0001>
module attributes {stable_mosaic.version = 11 : i64} {
  func.func @kernel(%arg0: i32, %arg1: i32, %arg2: i32, %arg3: memref<128x128xf32, #tpu.memory_space<vmem>>, %arg4: memref<128x128xf32, #tpu.memory_space<vmem>>, %arg5: memref<128x128xf32, #tpu.memory_space<vmem>>, %arg6: memref<128x128xf32, #tpu.memory_space<vmem>>) attributes {dimension_semantics = [#tpu.dimension_semantics<parallel>, #tpu.dimension_semantics<parallel>, #tpu.dimension_semantics<arbitrary>], iteration_bounds = array<i64: 2, 1, 2>, scalar_prefetch = 0 : i64, scratch_operands = 1 : i64, tpu.core_type = #tpu.core_type<tc>, window_params = [{transform_indices = @transform_0, window_bounds = array<i64: 128, 128>}, {transform_indices = @transform_1, window_bounds = array<i64: 128, 128>}, {transform_indices = @transform_2, window_bounds = array<i64: 128, 128>}]} {
    %c0_i32 = arith.constant 0 : i32
    %0 = arith.cmpi eq, %arg2, %c0_i32 : i32
    %1 = arith.extui %0 : i1 to i32
    %c0_i32_0 = arith.constant 0 : i32
    %2 = arith.cmpi ne, %1, %c0_i32_0 : i32
    scf.if %2 {
      %cst_9 = arith.constant 0.000000e+00 : f32
      %12 = vector.broadcast %cst_9 : f32 to vector<128x128xf32>
      %c0_10 = arith.constant 0 : index
      %c0_11 = arith.constant 0 : index
      %13 = vector.load %arg6[%c0_10, %c0_11] : memref<128x128xf32, #tpu.memory_space<vmem>>, vector<128x128xf32>
      tpu.vector_store %arg6[%c0_10, %c0_11], %12 {strides = array<i32>} : memref<128x128xf32, #tpu.memory_space<vmem>>, vector<128x128xf32>,
    } else {
    }
    %c0 = arith.constant 0 : index
    %c0_1 = arith.constant 0 : index
    %3 = vector.load %arg3[%c0, %c0_1] : memref<128x128xf32, #tpu.memory_space<vmem>>, vector<128x128xf32>
    %c0_2 = arith.constant 0 : index
    %c0_3 = arith.constant 0 : index
    %4 = vector.load %arg6[%c0_2, %c0_3] : memref<128x128xf32, #tpu.memory_space<vmem>>, vector<128x128xf32>
    %c0_4 = arith.constant 0 : index
    %c0_5 = arith.constant 0 : index
    %5 = vector.load %arg4[%c0_4, %c0_5] : memref<128x128xf32, #tpu.memory_space<vmem>>, vector<128x128xf32>
    %cst = arith.constant dense<0.000000e+00> : vector<128x128xf32>
    %6 = tpu.matmul %3, %5, %cst {dimension_numbers = #tpu.dot_dimension_numbers<[1], [0], [0], [1], [0, 0, 1, 1], [], []>, precision = #tpu.contract_precision<fp32>} : vector<128x128xf32>, vector<128x128xf32>, vector<128x128xf32> -> vector<128x128xf32>
    %7 = arith.addf %4, %6 : vector<128x128xf32>
    %c0_6 = arith.constant 0 : index
    %c0_7 = arith.constant 0 : index
    %8 = vector.load %arg6[%c0_6, %c0_7] : memref<128x128xf32, #tpu.memory_space<vmem>>, vector<128x128xf32>
    tpu.vector_store %arg6[%c0_6, %c0_7], %7 {strides = array<i32>} : memref<128x128xf32, #tpu.memory_space<vmem>>, vector<128x128xf32>,
    %c1_i32 = arith.constant 1 : i32
    %9 = arith.cmpi eq, %arg2, %c1_i32 : i32
    %10 = arith.extui %9 : i1 to i32
    %c0_i32_8 = arith.constant 0 : i32
    %11 = arith.cmpi ne, %10, %c0_i32_8 : i32
    scf.if %11 {
      %c0_9 = arith.constant 0 : index
      %c0_10 = arith.constant 0 : index
      %12 = vector.load %arg6[%c0_9, %c0_10] : memref<128x128xf32, #tpu.memory_space<vmem>>, vector<128x128xf32>
      %c0_11 = arith.constant 0 : index
      %c0_12 = arith.constant 0 : index
      %13 = vector.load %arg5[%c0_11, %c0_12] : memref<128x128xf32, #tpu.memory_space<vmem>>, vector<128x128xf32>
      tpu.vector_store %arg5[%c0_11, %c0_12], %12 {strides = array<i32>} : memref<128x128xf32, #tpu.memory_space<vmem>>, vector<128x128xf32>,
    } else {
    }
    return
  }
  func.func @transform_0(%arg0: i32, %arg1: i32, %arg2: i32) -> (i32, i32) {
    %c0_i32 = arith.constant 0 : i32
    return %arg0, %arg2 : i32, i32
  }
  func.func @transform_1(%arg0: i32, %arg1: i32, %arg2: i32) -> (i32, i32) {
    %c0_i32 = arith.constant 0 : i32
    return %arg2, %arg1 : i32, i32
  }
  func.func @transform_2(%arg0: i32, %arg1: i32, %arg2: i32) -> (i32, i32) {
    %c0_i32 = arith.constant 0 : i32
    return %arg0, %arg1 : i32, i32
  }
}

</mosaic_0001>

<llo_original>
// kernel: tpu_custom_call.1
$region0: #{tpu_custom_call.1}
  #allocation0 [shape = 'u32[]', space=smem, size = 0x4, offset = 0x4, fixed_abs, tag = 'smem constant byte address 0x4 - core index']
  #allocation1 [shape = 'u32[144,128]{1,0:T(1,128)}', space=vmem, size = 0x12000, scoped, tag = 'internal scratch']
  #allocation2 [shape = 'f32[128,128]{1,0:T(8,128)}', space=vmem, size = 0x10000, scoped, tag = 'scratch operand']
  %s0 = inlined_call_operand.hbm [shape: f32[256,256], index: 0, kind: input, shape index: {}]
  %s1 = inlined_call_operand.hbm [shape: f32[256,128], index: 1, kind: input, shape index: {}]
  %s2 = inlined_call_operand.hbm [shape: f32[256,128], index: 2, kind: output, shape index: {}]
  %s3 = sld [smem:[#allocation0]]
  $region57: #{tpu_custom_call.1} parent=0
    _
  %s5 = ssub.s32 1, %s3
  %s6 = scalar_select 0, %s5, %s3
  $region1: #{tpu_custom_call.1} parent=0
    #allocation3 [shape = 'u8[131072]{0}', space=vmem, size = 0x20000, scoped, tag = 'input window, operand 0']
    #allocation4 [shape = 's32[2]{0}', space=sflag, size = 0x8, scoped, tag = 'scoped memory for tpu_custom_call.1']
    #allocation5 [shape = 's32[2]{0}', space=sflag, size = 0x8, scoped, tag = 'scoped memory for tpu_custom_call.1']
    #allocation6 [shape = 'u8[131072]{0}', space=vmem, size = 0x20000, scoped, tag = 'input window, operand 1']
    #allocation7 [shape = 's32[2]{0}', space=sflag, size = 0x8, scoped, tag = 'scoped memory for tpu_custom_call.1']
    #allocation8 [shape = 'u8[131072]{0}', space=vmem, size = 0x20000, scoped, tag = 'output window, operand 0']
    %7 = vsyncpa [#allocation4], 0
    %s8 = scalar_lea.sflag [#allocation4], 1
    %9 = vsyncpa %s8, 0
    %10 = vsyncpa [#allocation7], 0
    %s11 = scalar_lea.sflag [#allocation7], 1
    %12 = vsyncpa %s11, 0
    %13 = vsyncpa [#allocation5], 0
    %s14 = scalar_lea.sflag [#allocation5], 1
    %15 = vsyncpa %s14, 0
    loop: start=0, step=1, limit=6
    $region2: #{tpu_custom_call.1} parent=1 // loop_pre_header
      _
    $region3: #{tpu_custom_call.1} parent=1 // loop_header
      %s17 = sphi 0, %s21
      %p18 = scmp.ge.s32.totalorder %s17, 6
      %s24 = sphi 0, %s43
      %s25 = sphi 0, %s39
      %s26 = sphi 0, %s35
      %s27 = sphi 0, %s24
      %s28 = sphi 0, %s25
      %s29 = sphi 0, %s26
      %s30 = sphi 0, %s27
      %s31 = sphi 0, %s28
      %s32 = sphi 0, %s29
      %s48 = sphi 0, %s50
      %s51 = sphi 0, %s48
      %s52 = sphi 0, %s51
      %s68 = sphi 0, %s52
      %s76 = sphi 0, %s78
      %s79 = sphi 0, %s76
      %s80 = sphi 0, %s79
      %s96 = sphi 0, %s80
      %s104 = sphi 0, %s106
      %s107 = sphi 0, %s104
      %s108 = sphi 0, %s107
      %s124 = sphi 0, %s108
    $region4: #{tpu_custom_call.1} parent=1 // loop_header_branch
      %20 = sbr.rel (%p18) target = $region8
    $region5: #{tpu_custom_call.1} parent=1 // loop_body
      %s22 = ssub.s32 %s17, 1
      %s23 = ssub.s32 %s17, 2
      %s33 = sadd.s32 1, %s26
      %p34 = scmp.ge.s32.totalorder %s33, 2
      %s35 = scalar_select %p34, 0, %s33
      %s36 = sadd.s32 1, %s25
      %s37 = scalar_select %p34, %s36, %s25
      %p38 = scmp.ge.s32.totalorder %s37, 1
      %s39 = scalar_select %p38, 0, %s37
      %s40 = sadd.s32 1, %s24
      %s41 = scalar_select %p38, %s40, %s24
      %p42 = scmp.ge.s32.totalorder %s41, 2
      %s43 = scalar_select %p42, 0, %s41
      %s44 = ssub.s32 %s24, %s43
      %s45 = ssub.s32 %s26, %s35
      %s46 = sor.u32 %s44, %s45
      %p47 = scmp.eq.s32.totalorder %s46, 0
      %s49 = sadd.s32 %s48, 1
      %s50 = scalar_select %p47, %s48, %s49
      %p53 = pneg %p47
      %p54 = scmp.eq.s32.totalorder %s17, 3
      %p55 = por %p53, %p54
      %p56 = scmp.ne.s32.totalorder %s48, %s51
      %p57 = scmp.eq.s32.totalorder %s17, 0
      %p58 = por %p56, %p57
      %p59 = scmp.ne.s32.totalorder %s48, %s51
      %p60 = scmp.eq.s32.totalorder %s22, 3
      %p61 = por %p59, %p60
      %p62 = scmp.ne.s32.totalorder %s51, %s52
      %p63 = scmp.eq.s32.totalorder %s22, 0
      %p64 = por %p62, %p63
      %p65 = scmp.ne.s32.totalorder %s51, %s52
      %p66 = scmp.eq.s32.totalorder %s23, 3
      %p67 = por %p65, %p66
      %p69 = scmp.ne.s32.totalorder %s52, %s68
      %p70 = scmp.eq.s32.totalorder %s23, 0
      %p71 = por %p69, %p70
      %s72 = ssub.s32 %s26, %s35
      %s73 = ssub.s32 %s25, %s39
      %s74 = sor.u32 %s72, %s73
      %p75 = scmp.eq.s32.totalorder %s74, 0
      %s77 = sadd.s32 %s76, 1
      %s78 = scalar_select %p75, %s76, %s77
      %p81 = pneg %p75
      %p82 = scmp.eq.s32.totalorder %s17, 3
      %p83 = por %p81, %p82
      %p84 = scmp.ne.s32.totalorder %s76, %s79
      %p85 = scmp.eq.s32.totalorder %s17, 0
      %p86 = por %p84, %p85
      %p87 = scmp.ne.s32.totalorder %s76, %s79
      %p88 = scmp.eq.s32.totalorder %s22, 3
      %p89 = por %p87, %p88
      %p90 = scmp.ne.s32.totalorder %s79, %s80
      %p91 = scmp.eq.s32.totalorder %s22, 0
      %p92 = por %p90, %p91
      %p93 = scmp.ne.s32.totalorder %s79, %s80
      %p94 = scmp.eq.s32.totalorder %s23, 3
      %p95 = por %p93, %p94
      %p97 = scmp.ne.s32.totalorder %s80, %s96
      %p98 = scmp.eq.s32.totalorder %s23, 0
      %p99 = por %p97, %p98
      %s100 = ssub.s32 %s24, %s43
      %s101 = ssub.s32 %s25, %s39
      %s102 = sor.u32 %s100, %s101
      %p103 = scmp.eq.s32.totalorder %s102, 0
      %s105 = sadd.s32 %s104, 1
      %s106 = scalar_select %p103, %s104, %s105
      %p109 = pneg %p103
      %p110 = scmp.eq.s32.totalorder %s17, 3
      %p111 = por %p109, %p110
      %p112 = scmp.ne.s32.totalorder %s104, %s107
      %p113 = scmp.eq.s32.totalorder %s17, 0
      %p114 = por %p112, %p113
      %p115 = scmp.ne.s32.totalorder %s104, %s107
      %p116 = scmp.eq.s32.totalorder %s22, 3
      %p117 = por %p115, %p116
      %p118 = scmp.ne.s32.totalorder %s107, %s108
      %p119 = scmp.eq.s32.totalorder %s22, 0
      %p120 = por %p118, %p119
      %p121 = scmp.ne.s32.totalorder %s107, %s108
      %p122 = scmp.eq.s32.totalorder %s23, 3
      %p123 = por %p121, %p122
      %p125 = scmp.ne.s32.totalorder %s108, %s124
      %p126 = scmp.eq.s32.totalorder %s23, 0
      %p127 = por %p125, %p126
      %p128 = scmp.le.s32.totalorder 1, %s17
      %p129 = scmp.lt.s32.totalorder %s17, 5
      %p130 = pnand %p128, %p129
      %p131 = pneg %p130
      // Predicated region
      $region9: #{tpu_custom_call.1} parent=5 // pred_check
        _
      $region10: #{tpu_custom_call.1} parent=5 // pred_check_branch
        %133 = sbr.rel (%p130) target = $region12
      $region11: #{tpu_custom_call.1} parent=5 // pred_region
        %s134 = ssub.s32 %s17, 1
      $region12: #{tpu_custom_call.1} parent=5 // pred_fallthru
        _
      %p135 = scmp.lt.s32.totalorder %s17, 4
      // Predicated region
      $region13: #{tpu_custom_call.1} parent=5 // pred_check
        %p136 = pneg %p135
      $region14: #{tpu_custom_call.1} parent=5 // pred_check_branch
        %138 = sbr.rel (%p136) target = $region16
      $region15: #{tpu_custom_call.1} parent=5 // pred_region
        // Predicated region
        $region17: #{tpu_custom_call.1} parent=15 // pred_check
          %p139 = pneg %p58
        $region18: #{tpu_custom_call.1} parent=15 // pred_check_branch
          %141 = sbr.rel (%p139) target = $region20
        $region19: #{tpu_custom_call.1} parent=15 // pred_region
          %s142 = sand.u32 %s48, 1
          %s143 = scalar_lea.sflag [#allocation4], %s142
          %s144 = sand.u32 %s48, 1
          %s145 = smul.addr %s144, 128
          %s146 = scalar_lea.vmem [#allocation3], %s145
          %s147 = smul.u32 16, %s24
          %s149 = ssub.s32 2048, 2048
          %150 = vsyncadd %s143, %s149
          %s151 = smul.addr %s147, 2
          %s152 = sadd.s32 %s26, %s151
          %s153 = smul.addr %s152, 128
          %s154 = scalar_lea.hbm %s0, %s153
          %s155 = sshll.u32 %s146, 4
          %s156 = int_to_ptr.vmem [resolvable:$true] %s155
          %161 = dma.hbm_to_vmem [thread:$0]  %s154, 2048, %s156, %s143, 256, 128, 8
        $region20: #{tpu_custom_call.1} parent=15 // pred_fallthru
          _
        // Predicated region
        $region21: #{tpu_custom_call.1} parent=15 // pred_check
          %p162 = pneg %p86
        $region22: #{tpu_custom_call.1} parent=15 // pred_check_branch
          %164 = sbr.rel (%p162) target = $region24
        $region23: #{tpu_custom_call.1} parent=15 // pred_region
          %s165 = sand.u32 %s76, 1
          %s166 = scalar_lea.sflag [#allocation7], %s165
          %s167 = sand.u32 %s76, 1
          %s168 = smul.addr %s167, 128
          %s169 = scalar_lea.vmem [#allocation6], %s168
          %s170 = smul.u32 16, %s26
          %s172 = ssub.s32 2048, 2048
          %173 = vsyncadd %s166, %s172
          %s174 = sadd.s32 %s25, %s170
          %s175 = smul.addr %s174, 128
          %s176 = scalar_lea.hbm %s1, %s175
          %s177 = sshll.u32 %s169, 4
          %s178 = int_to_ptr.vmem [resolvable:$true] %s177
          %183 = dma.hbm_to_vmem [thread:$0]  %s176, 2048, %s178, %s166, 128, 128, 8
        $region24: #{tpu_custom_call.1} parent=15 // pred_fallthru
          _
      $region16: #{tpu_custom_call.1} parent=5 // pred_fallthru
        _
      %p184 = scmp.le.s32.totalorder 1, %s17
      %p185 = scmp.lt.s32.totalorder %s17, 5
      %p186 = pnand %p184, %p185
      %p187 = pneg %p186
      // Predicated region
      $region25: #{tpu_custom_call.1} parent=5 // pred_check
        _
      $region26: #{tpu_custom_call.1} parent=5 // pred_check_branch
        %189 = sbr.rel (%p186) target = $region28
      $region27: #{tpu_custom_call.1} parent=5 // pred_region
        %s190 = ssub.s32 %s17, 1
        %s191 = sand.u32 %s51, 1
        %s192 = scalar_lea.sflag [#allocation4], %s191
        %s193 = sand.u32 %s51, 1
        %s194 = smul.addr %s193, 128
        %s195 = scalar_lea.vmem [#allocation3], %s194
        // Predicated region
        $region29: #{tpu_custom_call.1} parent=27 // pred_check
          %p196 = pneg %p64
        $region30: #{tpu_custom_call.1} parent=27 // pred_check_branch
          %198 = sbr.rel (%p196) target = $region32
        $region31: #{tpu_custom_call.1} parent=27 // pred_region
          %199 = dma.done %s192, 2048
        $region32: #{tpu_custom_call.1} parent=27 // pred_fallthru
          _
        %s200 = sand.u32 %s79, 1
        %s201 = scalar_lea.sflag [#allocation7], %s200
        %s202 = sand.u32 %s79, 1
        %s203 = smul.addr %s202, 128
        %s204 = scalar_lea.vmem [#allocation6], %s203
        // Predicated region
        $region33: #{tpu_custom_call.1} parent=27 // pred_check
          %p205 = pneg %p92
        $region34: #{tpu_custom_call.1} parent=27 // pred_check_branch
          %207 = sbr.rel (%p205) target = $region36
        $region35: #{tpu_custom_call.1} parent=27 // pred_region
          %208 = dma.done %s201, 2048
        $region36: #{tpu_custom_call.1} parent=27 // pred_fallthru
          _
        %s209 = sand.u32 %s51, 1
        %s210 = scalar_lea.sflag [#allocation4], %s209
        %s211 = sand.u32 %s51, 1
        %s212 = smul.addr %s211, 128
        %s213 = scalar_lea.vmem [#allocation3], %s212
        %p214 = pneg %p64
        %p215 = pneg %p61
        %s216 = sand.u32 %s79, 1
        %s217 = scalar_lea.sflag [#allocation7], %s216
        %s218 = sand.u32 %s79, 1
        %s219 = smul.addr %s218, 128
        %s220 = scalar_lea.vmem [#allocation6], %s219
        %p221 = pneg %p92
        %p222 = pneg %p89
        %p223 = pneg %p120
        %p224 = pneg %p117
        %s225 = sand.u32 %s107, 1
        %s226 = scalar_lea.sflag [#allocation5], %s225
        %s227 = sand.u32 %s107, 1
        %s228 = smul.addr %s227, 128
        %s229 = scalar_lea.vmem [#allocation8], %s228
        %s230 = smul.u32 16, %s27
        %s231 = smul.u32 16, %s29
        %s232 = smul.u32 16, %s27
        %p233 = scmp.eq.s32.totalorder %s29, 0
        // Predicated region
        $region37: #{tpu_custom_call.1} parent=27 // pred_check
          %p234 = pneg %p233
        $region38: #{tpu_custom_call.1} parent=27 // pred_check_branch
          %236 = sbr.rel (%p234) target = $region40
        $region39: #{tpu_custom_call.1} parent=27 // pred_region
          %237 = vst [vmem:[#allocation2] sm:$0xff] 0.0
          %238 = vst [vmem:[#allocation2 + $0x8] sm:$0xff] 0.0
          %239 = vst [vmem:[#allocation2 + $0x10] sm:$0xff] 0.0
          %240 = vst [vmem:[#allocation2 + $0x18] sm:$0xff] 0.0
          %241 = vst [vmem:[#allocation2 + $0x20] sm:$0xff] 0.0
          %242 = vst [vmem:[#allocation2 + $0x28] sm:$0xff] 0.0
          %243 = vst [vmem:[#allocation2 + $0x30] sm:$0xff] 0.0
          %244 = vst [vmem:[#allocation2 + $0x38] sm:$0xff] 0.0
          %245 = vst [vmem:[#allocation2 + $0x40] sm:$0xff] 0.0
          %246 = vst [vmem:[#allocation2 + $0x48] sm:$0xff] 0.0
          %247 = vst [vmem:[#allocation2 + $0x50] sm:$0xff] 0.0
          %248 = vst [vmem:[#allocation2 + $0x58] sm:$0xff] 0.0
          %249 = vst [vmem:[#allocation2 + $0x60] sm:$0xff] 0.0
          %250 = vst [vmem:[#allocation2 + $0x68] sm:$0xff] 0.0
          %251 = vst [vmem:[#allocation2 + $0x70] sm:$0xff] 0.0
          %252 = vst [vmem:[#allocation2 + $0x78] sm:$0xff] 0.0
        $region40: #{tpu_custom_call.1} parent=27 // pred_fallthru
          _
        %v253 = vld [vmem:[%s195] sm:$0xff]
        %v254 = vld [vmem:[%s195 + $0x8] sm:$0xff]
        %v255 = vld [vmem:[%s195 + $0x10] sm:$0xff]
        %v256 = vld [vmem:[%s195 + $0x18] sm:$0xff]
        %v257 = vld [vmem:[%s195 + $0x20] sm:$0xff]
        %v258 = vld [vmem:[%s195 + $0x28] sm:$0xff]
        %v259 = vld [vmem:[%s195 + $0x30] sm:$0xff]
        %v260 = vld [vmem:[%s195 + $0x38] sm:$0xff]
        %v261 = vld [vmem:[%s195 + $0x40] sm:$0xff]
        %v262 = vld [vmem:[%s195 + $0x48] sm:$0xff]
        %v263 = vld [vmem:[%s195 + $0x50] sm:$0xff]
        %v264 = vld [vmem:[%s195 + $0x58] sm:$0xff]
        %v265 = vld [vmem:[%s195 + $0x60] sm:$0xff]
        %v266 = vld [vmem:[%s195 + $0x68] sm:$0xff]
        %v267 = vld [vmem:[%s195 + $0x70] sm:$0xff]
        %v268 = vld [vmem:[%s195 + $0x78] sm:$0xff]
        %v269 = vld [vmem:[#allocation2] sm:$0xff]
        %v270 = vld [vmem:[#allocation2 + $0x8] sm:$0xff]
        %v271 = vld [vmem:[#allocation2 + $0x10] sm:$0xff]
        %v272 = vld [vmem:[#allocation2 + $0x18] sm:$0xff]
        %v273 = vld [vmem:[#allocation2 + $0x20] sm:$0xff]
        %v274 = vld [vmem:[#allocation2 + $0x28] sm:$0xff]
        %v275 = vld [vmem:[#allocation2 + $0x30] sm:$0xff]
        %v276 = vld [vmem:[#allocation2 + $0x38] sm:$0xff]
        %v277 = vld [vmem:[#allocation2 + $0x40] sm:$0xff]
        %v278 = vld [vmem:[#allocation2 + $0x48] sm:$0xff]
        %v279 = vld [vmem:[#allocation2 + $0x50] sm:$0xff]
        %v280 = vld [vmem:[#allocation2 + $0x58] sm:$0xff]
        %v281 = vld [vmem:[#allocation2 + $0x60] sm:$0xff]
        %v282 = vld [vmem:[#allocation2 + $0x68] sm:$0xff]
        %v283 = vld [vmem:[#allocation2 + $0x70] sm:$0xff]
        %v284 = vld [vmem:[#allocation2 + $0x78] sm:$0xff]
        %v285 = vld [vmem:[%s204] sm:$0xff]
        %v286 = vld [vmem:[%s204 + $0x8] sm:$0xff]
        %v287 = vld [vmem:[%s204 + $0x10] sm:$0xff]
        %v288 = vld [vmem:[%s204 + $0x18] sm:$0xff]
        %v289 = vld [vmem:[%s204 + $0x20] sm:$0xff]
        %v290 = vld [vmem:[%s204 + $0x28] sm:$0xff]
        %v291 = vld [vmem:[%s204 + $0x30] sm:$0xff]
        %v292 = vld [vmem:[%s204 + $0x38] sm:$0xff]
        %v293 = vld [vmem:[%s204 + $0x40] sm:$0xff]
        %v294 = vld [vmem:[%s204 + $0x48] sm:$0xff]
        %v295 = vld [vmem:[%s204 + $0x50] sm:$0xff]
        %v296 = vld [vmem:[%s204 + $0x58] sm:$0xff]
        %v297 = vld [vmem:[%s204 + $0x60] sm:$0xff]
        %v298 = vld [vmem:[%s204 + $0x68] sm:$0xff]
        %v299 = vld [vmem:[%s204 + $0x70] sm:$0xff]
        %v300 = vld [vmem:[%s204 + $0x78] sm:$0xff]
        %301 = vmatprep.subr.mxu0 0.0
        %v302 = vand.u32 %v300, 4294901760
        %303 = vmatpush1.msra.mxu0 %v302
        %304 = vmatprep.subr.mxu0 0.0
        %v305 = vand.u32 %v299, 4294901760
        %306 = vmatpush1.msra.mxu0 %v305
        %307 = vmatprep.subr.mxu0 0.0
        %v308 = vand.u32 %v298, 4294901760
        %309 = vmatpush1.msra.mxu0 %v308
        %310 = vmatprep.subr.mxu0 0.0
        %v311 = vand.u32 %v297, 4294901760
        %312 = vmatpush1.msra.mxu0 %v311
        %313 = vmatprep.subr.mxu0 0.0
        %v314 = vand.u32 %v296, 4294901760
        %315 = vmatpush1.msra.mxu0 %v314
        %316 = vmatprep.subr.mxu0 0.0
        %v317 = vand.u32 %v295, 4294901760
        %318 = vmatpush1.msra.mxu0 %v317
        %319 = vmatprep.subr.mxu0 0.0
        %v320 = vand.u32 %v294, 4294901760
        %321 = vmatpush1.msra.mxu0 %v320
        %322 = vmatprep.subr.mxu0 0.0
        %v323 = vand.u32 %v293, 4294901760
        %324 = vmatpush1.msra.mxu0 %v323
        %325 = vmatprep.subr.mxu0 0.0
        %v326 = vand.u32 %v292, 4294901760
        %327 = vmatpush1.msra.mxu0 %v326
        %328 = vmatprep.subr.mxu0 0.0
        %v329 = vand.u32 %v291, 4294901760
        %330 = vmatpush1.msra.mxu0 %v329
        %331 = vmatprep.subr.mxu0 0.0
        %v332 = vand.u32 %v290, 4294901760
        %333 = vmatpush1.msra.mxu0 %v332
        %334 = vmatprep.subr.mxu0 0.0
        %v335 = vand.u32 %v289, 4294901760
        %336 = vmatpush1.msra.mxu0 %v335
        %337 = vmatprep.subr.mxu0 0.0
        %v338 = vand.u32 %v288, 4294901760
        %339 = vmatpush1.msra.mxu0 %v338
        %340 = vmatprep.subr.mxu0 0.0
        %v341 = vand.u32 %v287, 4294901760
        %342 = vmatpush1.msra.mxu0 %v341
        %343 = vmatprep.subr.mxu0 0.0
        %v344 = vand.u32 %v286, 4294901760
        %345 = vmatpush1.msra.mxu0 %v344
        %346 = vmatprep.subr.mxu0 0.0
        %v347 = vand.u32 %v285, 4294901760
        %348 = vmatpush1.msra.mxu0 %v347
        %349 = vmatprep.subr.mxu0 0.0
        %350 = vmatpush2.msra.mxu0 0.0
        %351 = vmatprep.subr.mxu0 0.0
        %352 = vmatpush2.msra.mxu0 0.0
        %353 = vmatprep.subr.mxu0 0.0
        %354 = vmatpush2.msra.mxu0 0.0
        %355 = vmatprep.subr.mxu0 0.0
        %356 = vmatpush2.msra.mxu0 0.0
        %357 = vmatprep.subr.mxu0 0.0
        %358 = vmatpush2.msra.mxu0 0.0
        %359 = vmatprep.subr.mxu0 0.0
        %360 = vmatpush2.msra.mxu0 0.0
        %361 = vmatprep.subr.mxu0 0.0
        %362 = vmatpush2.msra.mxu0 0.0
        %363 = vmatprep.subr.mxu0 0.0
        %364 = vmatpush2.msra.mxu0 0.0
        %365 = vmatprep.subr.mxu0 0.0
        %366 = vmatpush2.msra.mxu0 0.0
        %367 = vmatprep.subr.mxu0 0.0
        %368 = vmatpush2.msra.mxu0 0.0
        %369 = vmatprep.subr.mxu0 0.0
        %370 = vmatpush2.msra.mxu0 0.0
        %371 = vmatprep.subr.mxu0 0.0
        %372 = vmatpush2.msra.mxu0 0.0
        %373 = vmatprep.subr.mxu0 0.0
        %374 = vmatpush2.msra.mxu0 0.0
        %375 = vmatprep.subr.mxu0 0.0
        %376 = vmatpush2.msra.mxu0 0.0
        %377 = vmatprep.subr.mxu0 0.0
        %378 = vmatpush2.msra.mxu0 0.0
        %379 = vmatprep.subr.mxu0 0.0
        %380 = vmatpush2.msra.mxu0 0.0
        %381 = vmatprep.mubr.f32.mxu0 0.0
        %v382 = vand.u32 %v253, 4294901760
        %v383 = vsub.f32 %v253, %v382
        %v384 = vand.u32 %v383, 4294901760
        %v385 = vsub.f32 %v383, %v384
        %v386 = vand.u32 %v385, 4294901760
        %387 = vmatmul.mubr.f32.gmra.mxu0 %v386
        %v388 = vpop.f32.mrf.mxu0
        %v389 = vadd.f32 0.0, %v388
        %v390 = vpop.f32.mrf.mxu0
        %391 = vmatprep.mubr.f32.mxu0 0.0
        %v392 = vand.u32 %v254, 4294901760
        %v393 = vsub.f32 %v254, %v392
        %v394 = vand.u32 %v393, 4294901760
        %v395 = vsub.f32 %v393, %v394
        %v396 = vand.u32 %v395, 4294901760
        %397 = vmatmul.mubr.f32.gmra.mxu0 %v396
        %v398 = vpop.f32.mrf.mxu0
        %v399 = vadd.f32 0.0, %v398
        %v400 = vpop.f32.mrf.mxu0
        %401 = vmatprep.mubr.f32.mxu0 0.0
        %v402 = vand.u32 %v255, 4294901760
        %v403 = vsub.f32 %v255, %v402
        %v404 = vand.u32 %v403, 4294901760
        %v405 = vsub.f32 %v403, %v404
        %v406 = vand.u32 %v405, 4294901760
        %407 = vmatmul.mubr.f32.gmra.mxu0 %v406
        %v408 = vpop.f32.mrf.mxu0
        %v409 = vadd.f32 0.0, %v408
        %v410 = vpop.f32.mrf.mxu0
        %411 = vmatprep.mubr.f32.mxu0 0.0
        %v412 = vand.u32 %v256, 4294901760
        %v413 = vsub.f32 %v256, %v412
        %v414 = vand.u32 %v413, 4294901760
        %v415 = vsub.f32 %v413, %v414
        %v416 = vand.u32 %v415, 4294901760
        %417 = vmatmul.mubr.f32.gmra.mxu0 %v416
        %v418 = vpop.f32.mrf.mxu0
        %v419 = vadd.f32 0.0, %v418
        %v420 = vpop.f32.mrf.mxu0
        %421 = vmatprep.mubr.f32.mxu0 0.0
        %v422 = vand.u32 %v257, 4294901760
        %v423 = vsub.f32 %v257, %v422
        %v424 = vand.u32 %v423, 4294901760
        %v425 = vsub.f32 %v423, %v424
        %v426 = vand.u32 %v425, 4294901760
        %427 = vmatmul.mubr.f32.gmra.mxu0 %v426
        %v428 = vpop.f32.mrf.mxu0
        %v429 = vadd.f32 0.0, %v428
        %v430 = vpop.f32.mrf.mxu0
        %431 = vmatprep.mubr.f32.mxu0 0.0
        %v432 = vand.u32 %v258, 4294901760
        %v433 = vsub.f32 %v258, %v432
        %v434 = vand.u32 %v433, 4294901760
        %v435 = vsub.f32 %v433, %v434
        %v436 = vand.u32 %v435, 4294901760
        %437 = vmatmul.mubr.f32.gmra.mxu0 %v436
        %v438 = vpop.f32.mrf.mxu0
        %v439 = vadd.f32 0.0, %v438
        %v440 = vpop.f32.mrf.mxu0
        %441 = vmatprep.mubr.f32.mxu0 0.0
        %v442 = vand.u32 %v259, 4294901760
        %v443 = vsub.f32 %v259, %v442
        %v444 = vand.u32 %v443, 4294901760
        %v445 = vsub.f32 %v443, %v444
        %v446 = vand.u32 %v445, 4294901760
        %447 = vmatmul.mubr.f32.gmra.mxu0 %v446
        %v448 = vpop.f32.mrf.mxu0
        %v449 = vadd.f32 0.0, %v448
        %v450 = vpop.f32.mrf.mxu0
        %451 = vmatprep.mubr.f32.mxu0 0.0
        %v452 = vand.u32 %v260, 4294901760
        %v453 = vsub.f32 %v260, %v452
        %v454 = vand.u32 %v453, 4294901760
        %v455 = vsub.f32 %v453, %v454
        %v456 = vand.u32 %v455, 4294901760
        %457 = vmatmul.mubr.f32.gmra.mxu0 %v456
        %v458 = vpop.f32.mrf.mxu0
        %v459 = vadd.f32 0.0, %v458
        %v460 = vpop.f32.mrf.mxu0
        %461 = vmatprep.mubr.f32.mxu0 0.0
        %v462 = vand.u32 %v261, 4294901760
        %v463 = vsub.f32 %v261, %v462
        %v464 = vand.u32 %v463, 4294901760
        %v465 = vsub.f32 %v463, %v464
        %v466 = vand.u32 %v465, 4294901760
        %467 = vmatmul.mubr.f32.gmra.mxu0 %v466
        %v468 = vpop.f32.mrf.mxu0
        %v469 = vadd.f32 0.0, %v468
        %v470 = vpop.f32.mrf.mxu0
        %471 = vmatprep.mubr.f32.mxu0 0.0
        %v472 = vand.u32 %v262, 4294901760
        %v473 = vsub.f32 %v262, %v472
        %v474 = vand.u32 %v473, 4294901760
        %v475 = vsub.f32 %v473, %v474
        %v476 = vand.u32 %v475, 4294901760
        %477 = vmatmul.mubr.f32.gmra.mxu0 %v476
        %v478 = vpop.f32.mrf.mxu0
        %v479 = vadd.f32 0.0, %v478
        %v480 = vpop.f32.mrf.mxu0
        %481 = vmatprep.mubr.f32.mxu0 0.0
        %v482 = vand.u32 %v263, 4294901760
        %v483 = vsub.f32 %v263, %v482
        %v484 = vand.u32 %v483, 4294901760
        %v485 = vsub.f32 %v483, %v484
        %v486 = vand.u32 %v485, 4294901760
        %487 = vmatmul.mubr.f32.gmra.mxu0 %v486
        %v488 = vpop.f32.mrf.mxu0
        %v489 = vadd.f32 0.0, %v488
        %v490 = vpop.f32.mrf.mxu0
        %491 = vmatprep.mubr.f32.mxu0 0.0
        %v492 = vand.u32 %v264, 4294901760
        %v493 = vsub.f32 %v264, %v492
        %v494 = vand.u32 %v493, 4294901760
        %v495 = vsub.f32 %v493, %v494
        %v496 = vand.u32 %v495, 4294901760
        %497 = vmatmul.mubr.f32.gmra.mxu0 %v496
        %v498 = vpop.f32.mrf.mxu0
        %v499 = vadd.f32 0.0, %v498
        %v500 = vpop.f32.mrf.mxu0
        %501 = vmatprep.mubr.f32.mxu0 0.0
        %v502 = vand.u32 %v265, 4294901760
        %v503 = vsub.f32 %v265, %v502
        %v504 = vand.u32 %v503, 4294901760
        %v505 = vsub.f32 %v503, %v504
        %v506 = vand.u32 %v505, 4294901760
        %507 = vmatmul.mubr.f32.gmra.mxu0 %v506
        %v508 = vpop.f32.mrf.mxu0
        %v509 = vadd.f32 0.0, %v508
        %v510 = vpop.f32.mrf.mxu0
        %511 = vmatprep.mubr.f32.mxu0 0.0
        %v512 = vand.u32 %v266, 4294901760
        %v513 = vsub.f32 %v266, %v512
        %v514 = vand.u32 %v513, 4294901760
        %v515 = vsub.f32 %v513, %v514
        %v516 = vand.u32 %v515, 4294901760
        %517 = vmatmul.mubr.f32.gmra.mxu0 %v516
        %v518 = vpop.f32.mrf.mxu0
        %v519 = vadd.f32 0.0, %v518
        %v520 = vpop.f32.mrf.mxu0
        %521 = vmatprep.mubr.f32.mxu0 0.0
        %v522 = vand.u32 %v267, 4294901760
        %v523 = vsub.f32 %v267, %v522
        %v524 = vand.u32 %v523, 4294901760
        %v525 = vsub.f32 %v523, %v524
        %v526 = vand.u32 %v525, 4294901760
        %527 = vmatmul.mubr.f32.gmra.mxu0 %v526
        %v528 = vpop.f32.mrf.mxu0
        %v529 = vadd.f32 0.0, %v528
        %v530 = vpop.f32.mrf.mxu0
        %531 = vmatprep.mubr.f32.mxu0 0.0
        %v532 = vand.u32 %v268, 4294901760
        %v533 = vsub.f32 %v268, %v532
        %v534 = vand.u32 %v533, 4294901760
        %v535 = vsub.f32 %v533, %v534
        %v536 = vand.u32 %v535, 4294901760
        %537 = vmatmul.mubr.f32.gmra.mxu0 %v536
        %v538 = vpop.f32.mrf.mxu0
        %v539 = vadd.f32 0.0, %v538
        %v540 = vpop.f32.mrf.mxu0
        %541 = vdwg.mxu0
        %542 = vmatprep.subr.mxu0 0.0
        %v543 = vand.u32 %v300, 4294901760
        %v544 = vsub.f32 %v300, %v543
        %v545 = vand.u32 %v544, 4294901760
        %v546 = vsub.f32 %v544, %v545
        %v547 = vand.u32 %v546, 4294901760
        %548 = vmatpush1.msra.mxu0 %v547
        %549 = vmatprep.subr.mxu0 0.0
        %v550 = vand.u32 %v299, 4294901760
        %v551 = vsub.f32 %v299, %v550
        %v552 = vand.u32 %v551, 4294901760
        %v553 = vsub.f32 %v551, %v552
        %v554 = vand.u32 %v553, 4294901760
        %555 = vmatpush1.msra.mxu0 %v554
        %556 = vmatprep.subr.mxu0 0.0
        %v557 = vand.u32 %v298, 4294901760
        %v558 = vsub.f32 %v298, %v557
        %v559 = vand.u32 %v558, 4294901760
        %v560 = vsub.f32 %v558, %v559
        %v561 = vand.u32 %v560, 4294901760
        %562 = vmatpush1.msra.mxu0 %v561
        %563 = vmatprep.subr.mxu0 0.0
        %v564 = vand.u32 %v297, 4294901760
        %v565 = vsub.f32 %v297, %v564
        %v566 = vand.u32 %v565, 4294901760
        %v567 = vsub.f32 %v565, %v566
        %v568 = vand.u32 %v567, 4294901760
        %569 = vmatpush1.msra.mxu0 %v568
        %570 = vmatprep.subr.mxu0 0.0
        %v571 = vand.u32 %v296, 4294901760
        %v572 = vsub.f32 %v296, %v571
        %v573 = vand.u32 %v572, 4294901760
        %v574 = vsub.f32 %v572, %v573
        %v575 = vand.u32 %v574, 4294901760
        %576 = vmatpush1.msra.mxu0 %v575
        %577 = vmatprep.subr.mxu0 0.0
        %v578 = vand.u32 %v295, 4294901760
        %v579 = vsub.f32 %v295, %v578
        %v580 = vand.u32 %v579, 4294901760
        %v581 = vsub.f32 %v579, %v580
        %v582 = vand.u32 %v581, 4294901760
        %583 = vmatpush1.msra.mxu0 %v582
        %584 = vmatprep.subr.mxu0 0.0
        %v585 = vand.u32 %v294, 4294901760
        %v586 = vsub.f32 %v294, %v585
        %v587 = vand.u32 %v586, 4294901760
        %v588 = vsub.f32 %v586, %v587
        %v589 = vand.u32 %v588, 4294901760
        %590 = vmatpush1.msra.mxu0 %v589
        %591 = vmatprep.subr.mxu0 0.0
        %v592 = vand.u32 %v293, 4294901760
        %v593 = vsub.f32 %v293, %v592
        %v594 = vand.u32 %v593, 4294901760
        %v595 = vsub.f32 %v593, %v594
        %v596 = vand.u32 %v595, 4294901760
        %597 = vmatpush1.msra.mxu0 %v596
        %598 = vmatprep.subr.mxu0 0.0
        %v599 = vand.u32 %v292, 4294901760
        %v600 = vsub.f32 %v292, %v599
        %v601 = vand.u32 %v600, 4294901760
        %v602 = vsub.f32 %v600, %v601
        %v603 = vand.u32 %v602, 4294901760
        %604 = vmatpush1.msra.mxu0 %v603
        %605 = vmatprep.subr.mxu0 0.0
        %v606 = vand.u32 %v291, 4294901760
        %v607 = vsub.f32 %v291, %v606
        %v608 = vand.u32 %v607, 4294901760
        %v609 = vsub.f32 %v607, %v608
        %v610 = vand.u32 %v609, 4294901760
        %611 = vmatpush1.msra.mxu0 %v610
        %612 = vmatprep.subr.mxu0 0.0
        %v613 = vand.u32 %v290, 4294901760
        %v614 = vsub.f32 %v290, %v613
        %v615 = vand.u32 %v614, 4294901760
        %v616 = vsub.f32 %v614, %v615
        %v617 = vand.u32 %v616, 4294901760
        %618 = vmatpush1.msra.mxu0 %v617
        %619 = vmatprep.subr.mxu0 0.0
        %v620 = vand.u32 %v289, 4294901760
        %v621 = vsub.f32 %v289, %v620
        %v622 = vand.u32 %v621, 4294901760
        %v623 = vsub.f32 %v621, %v622
        %v624 = vand.u32 %v623, 4294901760
        %625 = vmatpush1.msra.mxu0 %v624
        %626 = vmatprep.subr.mxu0 0.0
        %v627 = vand.u32 %v288, 4294901760
        %v628 = vsub.f32 %v288, %v627
        %v629 = vand.u32 %v628, 4294901760
        %v630 = vsub.f32 %v628, %v629
        %v631 = vand.u32 %v630, 4294901760
        %632 = vmatpush1.msra.mxu0 %v631
        %633 = vmatprep.subr.mxu0 0.0
        %v634 = vand.u32 %v287, 4294901760
        %v635 = vsub.f32 %v287, %v634
        %v636 = vand.u32 %v635, 4294901760
        %v637 = vsub.f32 %v635, %v636
        %v638 = vand.u32 %v637, 4294901760
        %639 = vmatpush1.msra.mxu0 %v638
        %640 = vmatprep.subr.mxu0 0.0
        %v641 = vand.u32 %v286, 4294901760
        %v642 = vsub.f32 %v286, %v641
        %v643 = vand.u32 %v642, 4294901760
        %v644 = vsub.f32 %v642, %v643
        %v645 = vand.u32 %v644, 4294901760
        %646 = vmatpush1.msra.mxu0 %v645
        %647 = vmatprep.subr.mxu0 0.0
        %v648 = vand.u32 %v285, 4294901760
        %v649 = vsub.f32 %v285, %v648
        %v650 = vand.u32 %v649, 4294901760
        %v651 = vsub.f32 %v649, %v650
        %v652 = vand.u32 %v651, 4294901760
        %653 = vmatpush1.msra.mxu0 %v652
        %654 = vmatprep.subr.mxu0 0.0
        %655 = vmatpush2.msra.mxu0 0.0
        %656 = vmatprep.subr.mxu0 0.0
        %657 = vmatpush2.msra.mxu0 0.0
        %658 = vmatprep.subr.mxu0 0.0
        %659 = vmatpush2.msra.mxu0 0.0
        %660 = vmatprep.subr.mxu0 0.0
        %661 = vmatpush2.msra.mxu0 0.0
        %662 = vmatprep.subr.mxu0 0.0
        %663 = vmatpush2.msra.mxu0 0.0
        %664 = vmatprep.subr.mxu0 0.0
        %665 = vmatpush2.msra.mxu0 0.0
        %666 = vmatprep.subr.mxu0 0.0
        %667 = vmatpush2.msra.mxu0 0.0
        %668 = vmatprep.subr.mxu0 0.0
        %669 = vmatpush2.msra.mxu0 0.0
        %670 = vmatprep.subr.mxu0 0.0
        %671 = vmatpush2.msra.mxu0 0.0
        %672 = vmatprep.subr.mxu0 0.0
        %673 = vmatpush2.msra.mxu0 0.0
        %674 = vmatprep.subr.mxu0 0.0
        %675 = vmatpush2.msra.mxu0 0.0
        %676 = vmatprep.subr.mxu0 0.0
        %677 = vmatpush2.msra.mxu0 0.0
        %678 = vmatprep.subr.mxu0 0.0
        %679 = vmatpush2.msra.mxu0 0.0
        %680 = vmatprep.subr.mxu0 0.0
        %681 = vmatpush2.msra.mxu0 0.0
        %682 = vmatprep.subr.mxu0 0.0
        %683 = vmatpush2.msra.mxu0 0.0
        %684 = vmatprep.subr.mxu0 0.0
        %685 = vmatpush2.msra.mxu0 0.0
        %686 = vmatprep.mubr.f32.mxu0 0.0
        %v687 = vand.u32 %v253, 4294901760
        %688 = vmatmul.mubr.f32.gmra.mxu0 %v687
        %v689 = vpop.f32.mrf.mxu0
        %v690 = vadd.f32 %v389, %v689
        %v691 = vpop.f32.mrf.mxu0
        %692 = vmatprep.mubr.f32.mxu0 0.0
        %v693 = vand.u32 %v254, 4294901760
        %694 = vmatmul.mubr.f32.gmra.mxu0 %v693
        %v695 = vpop.f32.mrf.mxu0
        %v696 = vadd.f32 %v399, %v695
        %v697 = vpop.f32.mrf.mxu0
        %698 = vmatprep.mubr.f32.mxu0 0.0
        %v699 = vand.u32 %v255, 4294901760
        %700 = vmatmul.mubr.f32.gmra.mxu0 %v699
        %v701 = vpop.f32.mrf.mxu0
        %v702 = vadd.f32 %v409, %v701
        %v703 = vpop.f32.mrf.mxu0
        %704 = vmatprep.mubr.f32.mxu0 0.0
        %v705 = vand.u32 %v256, 4294901760
        %706 = vmatmul.mubr.f32.gmra.mxu0 %v705
        %v707 = vpop.f32.mrf.mxu0
        %v708 = vadd.f32 %v419, %v707
        %v709 = vpop.f32.mrf.mxu0
        %710 = vmatprep.mubr.f32.mxu0 0.0
        %v711 = vand.u32 %v257, 4294901760
        %712 = vmatmul.mubr.f32.gmra.mxu0 %v711
        %v713 = vpop.f32.mrf.mxu0
        %v714 = vadd.f32 %v429, %v713
        %v715 = vpop.f32.mrf.mxu0
        %716 = vmatprep.mubr.f32.mxu0 0.0
        %v717 = vand.u32 %v258, 4294901760
        %718 = vmatmul.mubr.f32.gmra.mxu0 %v717
        %v719 = vpop.f32.mrf.mxu0
        %v720 = vadd.f32 %v439, %v719
        %v721 = vpop.f32.mrf.mxu0
        %722 = vmatprep.mubr.f32.mxu0 0.0
        %v723 = vand.u32 %v259, 4294901760
        %724 = vmatmul.mubr.f32.gmra.mxu0 %v723
        %v725 = vpop.f32.mrf.mxu0
        %v726 = vadd.f32 %v449, %v725
        %v727 = vpop.f32.mrf.mxu0
        %728 = vmatprep.mubr.f32.mxu0 0.0
        %v729 = vand.u32 %v260, 4294901760
        %730 = vmatmul.mubr.f32.gmra.mxu0 %v729
        %v731 = vpop.f32.mrf.mxu0
        %v732 = vadd.f32 %v459, %v731
        %v733 = vpop.f32.mrf.mxu0
        %734 = vmatprep.mubr.f32.mxu0 0.0
        %v735 = vand.u32 %v261, 4294901760
        %736 = vmatmul.mubr.f32.gmra.mxu0 %v735
        %v737 = vpop.f32.mrf.mxu0
        %v738 = vadd.f32 %v469, %v737
        %v739 = vpop.f32.mrf.mxu0
        %740 = vmatprep.mubr.f32.mxu0 0.0
        %v741 = vand.u32 %v262, 4294901760
        %742 = vmatmul.mubr.f32.gmra.mxu0 %v741
        %v743 = vpop.f32.mrf.mxu0
        %v744 = vadd.f32 %v479, %v743
        %v745 = vpop.f32.mrf.mxu0
        %746 = vmatprep.mubr.f32.mxu0 0.0
        %v747 = vand.u32 %v263, 4294901760
        %748 = vmatmul.mubr.f32.gmra.mxu0 %v747
        %v749 = vpop.f32.mrf.mxu0
        %v750 = vadd.f32 %v489, %v749
        %v751 = vpop.f32.mrf.mxu0
        %752 = vmatprep.mubr.f32.mxu0 0.0
        %v753 = vand.u32 %v264, 4294901760
        %754 = vmatmul.mubr.f32.gmra.mxu0 %v753
        %v755 = vpop.f32.mrf.mxu0
        %v756 = vadd.f32 %v499, %v755
        %v757 = vpop.f32.mrf.mxu0
        %758 = vmatprep.mubr.f32.mxu0 0.0
        %v759 = vand.u32 %v265, 4294901760
        %760 = vmatmul.mubr.f32.gmra.mxu0 %v759
        %v761 = vpop.f32.mrf.mxu0
        %v762 = vadd.f32 %v509, %v761
        %v763 = vpop.f32.mrf.mxu0
        %764 = vmatprep.mubr.f32.mxu0 0.0
        %v765 = vand.u32 %v266, 4294901760
        %766 = vmatmul.mubr.f32.gmra.mxu0 %v765
        %v767 = vpop.f32.mrf.mxu0
        %v768 = vadd.f32 %v519, %v767
        %v769 = vpop.f32.mrf.mxu0
        %770 = vmatprep.mubr.f32.mxu0 0.0
        %v771 = vand.u32 %v267, 4294901760
        %772 = vmatmul.mubr.f32.gmra.mxu0 %v771
        %v773 = vpop.f32.mrf.mxu0
        %v774 = vadd.f32 %v529, %v773
        %v775 = vpop.f32.mrf.mxu0
        %776 = vmatprep.mubr.f32.mxu0 0.0
        %v777 = vand.u32 %v268, 4294901760
        %778 = vmatmul.mubr.f32.gmra.mxu0 %v777
        %v779 = vpop.f32.mrf.mxu0
        %v780 = vadd.f32 %v539, %v779
        %v781 = vpop.f32.mrf.mxu0
        %782 = vdwg.mxu0
        %783 = vmatprep.subr.mxu0 0.0
        %v784 = vand.u32 %v300, 4294901760
        %v785 = vsub.f32 %v300, %v784
        %786 = vmatpush1.msra.mxu0 %v785
        %787 = vmatprep.subr.mxu0 0.0
        %v788 = vand.u32 %v299, 4294901760
        %v789 = vsub.f32 %v299, %v788
        %790 = vmatpush1.msra.mxu0 %v789
        %791 = vmatprep.subr.mxu0 0.0
        %v792 = vand.u32 %v298, 4294901760
        %v793 = vsub.f32 %v298, %v792
        %794 = vmatpush1.msra.mxu0 %v793
        %795 = vmatprep.subr.mxu0 0.0
        %v796 = vand.u32 %v297, 4294901760
        %v797 = vsub.f32 %v297, %v796
        %798 = vmatpush1.msra.mxu0 %v797
        %799 = vmatprep.subr.mxu0 0.0
        %v800 = vand.u32 %v296, 4294901760
        %v801 = vsub.f32 %v296, %v800
        %802 = vmatpush1.msra.mxu0 %v801
        %803 = vmatprep.subr.mxu0 0.0
        %v804 = vand.u32 %v295, 4294901760
        %v805 = vsub.f32 %v295, %v804
        %806 = vmatpush1.msra.mxu0 %v805
        %807 = vmatprep.subr.mxu0 0.0
        %v808 = vand.u32 %v294, 4294901760
        %v809 = vsub.f32 %v294, %v808
        %810 = vmatpush1.msra.mxu0 %v809
        %811 = vmatprep.subr.mxu0 0.0
        %v812 = vand.u32 %v293, 4294901760
        %v813 = vsub.f32 %v293, %v812
        %814 = vmatpush1.msra.mxu0 %v813
        %815 = vmatprep.subr.mxu0 0.0
        %v816 = vand.u32 %v292, 4294901760
        %v817 = vsub.f32 %v292, %v816
        %818 = vmatpush1.msra.mxu0 %v817
        %819 = vmatprep.subr.mxu0 0.0
        %v820 = vand.u32 %v291, 4294901760
        %v821 = vsub.f32 %v291, %v820
        %822 = vmatpush1.msra.mxu0 %v821
        %823 = vmatprep.subr.mxu0 0.0
        %v824 = vand.u32 %v290, 4294901760
        %v825 = vsub.f32 %v290, %v824
        %826 = vmatpush1.msra.mxu0 %v825
        %827 = vmatprep.subr.mxu0 0.0
        %v828 = vand.u32 %v289, 4294901760
        %v829 = vsub.f32 %v289, %v828
        %830 = vmatpush1.msra.mxu0 %v829
        %831 = vmatprep.subr.mxu0 0.0
        %v832 = vand.u32 %v288, 4294901760
        %v833 = vsub.f32 %v288, %v832
        %834 = vmatpush1.msra.mxu0 %v833
        %835 = vmatprep.subr.mxu0 0.0
        %v836 = vand.u32 %v287, 4294901760
        %v837 = vsub.f32 %v287, %v836
        %838 = vmatpush1.msra.mxu0 %v837
        %839 = vmatprep.subr.mxu0 0.0
        %v840 = vand.u32 %v286, 4294901760
        %v841 = vsub.f32 %v286, %v840
        %842 = vmatpush1.msra.mxu0 %v841
        %843 = vmatprep.subr.mxu0 0.0
        %v844 = vand.u32 %v285, 4294901760
        %v845 = vsub.f32 %v285, %v844
        %846 = vmatpush1.msra.mxu0 %v845
        %847 = vmatprep.subr.mxu0 0.0
        %848 = vmatpush2.msra.mxu0 0.0
        %849 = vmatprep.subr.mxu0 0.0
        %850 = vmatpush2.msra.mxu0 0.0
        %851 = vmatprep.subr.mxu0 0.0
        %852 = vmatpush2.msra.mxu0 0.0
        %853 = vmatprep.subr.mxu0 0.0
        %854 = vmatpush2.msra.mxu0 0.0
        %855 = vmatprep.subr.mxu0 0.0
        %856 = vmatpush2.msra.mxu0 0.0
        %857 = vmatprep.subr.mxu0 0.0
        %858 = vmatpush2.msra.mxu0 0.0
        %859 = vmatprep.subr.mxu0 0.0
        %860 = vmatpush2.msra.mxu0 0.0
        %861 = vmatprep.subr.mxu0 0.0
        %862 = vmatpush2.msra.mxu0 0.0
        %863 = vmatprep.subr.mxu0 0.0
        %864 = vmatpush2.msra.mxu0 0.0
        %865 = vmatprep.subr.mxu0 0.0
        %866 = vmatpush2.msra.mxu0 0.0
        %867 = vmatprep.subr.mxu0 0.0
        %868 = vmatpush2.msra.mxu0 0.0
        %869 = vmatprep.subr.mxu0 0.0
        %870 = vmatpush2.msra.mxu0 0.0
        %871 = vmatprep.subr.mxu0 0.0
        %872 = vmatpush2.msra.mxu0 0.0
        %873 = vmatprep.subr.mxu0 0.0
        %874 = vmatpush2.msra.mxu0 0.0
        %875 = vmatprep.subr.mxu0 0.0
        %876 = vmatpush2.msra.mxu0 0.0
        %877 = vmatprep.subr.mxu0 0.0
        %878 = vmatpush2.msra.mxu0 0.0
        %879 = vmatprep.mubr.f32.mxu0 0.0
        %v880 = vand.u32 %v253, 4294901760
        %v881 = vsub.f32 %v253, %v880
        %882 = vmatmul.mubr.f32.gmra.mxu0 %v881
        %v883 = vpop.f32.mrf.mxu0
        %v884 = vadd.f32 %v690, %v883
        %v885 = vpop.f32.mrf.mxu0
        %886 = vmatprep.mubr.f32.mxu0 0.0
        %v887 = vand.u32 %v254, 4294901760
        %v888 = vsub.f32 %v254, %v887
        %889 = vmatmul.mubr.f32.gmra.mxu0 %v888
        %v890 = vpop.f32.mrf.mxu0
        %v891 = vadd.f32 %v696, %v890
        %v892 = vpop.f32.mrf.mxu0
        %893 = vmatprep.mubr.f32.mxu0 0.0
        %v894 = vand.u32 %v255, 4294901760
        %v895 = vsub.f32 %v255, %v894
        %896 = vmatmul.mubr.f32.gmra.mxu0 %v895
        %v897 = vpop.f32.mrf.mxu0
        %v898 = vadd.f32 %v702, %v897
        %v899 = vpop.f32.mrf.mxu0
        %900 = vmatprep.mubr.f32.mxu0 0.0
        %v901 = vand.u32 %v256, 4294901760
        %v902 = vsub.f32 %v256, %v901
        %903 = vmatmul.mubr.f32.gmra.mxu0 %v902
        %v904 = vpop.f32.mrf.mxu0
        %v905 = vadd.f32 %v708, %v904
        %v906 = vpop.f32.mrf.mxu0
        %907 = vmatprep.mubr.f32.mxu0 0.0
        %v908 = vand.u32 %v257, 4294901760
        %v909 = vsub.f32 %v257, %v908
        %910 = vmatmul.mubr.f32.gmra.mxu0 %v909
        %v911 = vpop.f32.mrf.mxu0
        %v912 = vadd.f32 %v714, %v911
        %v913 = vpop.f32.mrf.mxu0
        %914 = vmatprep.mubr.f32.mxu0 0.0
        %v915 = vand.u32 %v258, 4294901760
        %v916 = vsub.f32 %v258, %v915
        %917 = vmatmul.mubr.f32.gmra.mxu0 %v916
        %v918 = vpop.f32.mrf.mxu0
        %v919 = vadd.f32 %v720, %v918
        %v920 = vpop.f32.mrf.mxu0
        %921 = vmatprep.mubr.f32.mxu0 0.0
        %v922 = vand.u32 %v259, 4294901760
        %v923 = vsub.f32 %v259, %v922
        %924 = vmatmul.mubr.f32.gmra.mxu0 %v923
        %v925 = vpop.f32.mrf.mxu0
        %v926 = vadd.f32 %v726, %v925
        %v927 = vpop.f32.mrf.mxu0
        %928 = vmatprep.mubr.f32.mxu0 0.0
        %v929 = vand.u32 %v260, 4294901760
        %v930 = vsub.f32 %v260, %v929
        %931 = vmatmul.mubr.f32.gmra.mxu0 %v930
        %v932 = vpop.f32.mrf.mxu0
        %v933 = vadd.f32 %v732, %v932
        %v934 = vpop.f32.mrf.mxu0
        %935 = vmatprep.mubr.f32.mxu0 0.0
        %v936 = vand.u32 %v261, 4294901760
        %v937 = vsub.f32 %v261, %v936
        %938 = vmatmul.mubr.f32.gmra.mxu0 %v937
        %v939 = vpop.f32.mrf.mxu0
        %v940 = vadd.f32 %v738, %v939
        %v941 = vpop.f32.mrf.mxu0
        %942 = vmatprep.mubr.f32.mxu0 0.0
        %v943 = vand.u32 %v262, 4294901760
        %v944 = vsub.f32 %v262, %v943
        %945 = vmatmul.mubr.f32.gmra.mxu0 %v944
        %v946 = vpop.f32.mrf.mxu0
        %v947 = vadd.f32 %v744, %v946
        %v948 = vpop.f32.mrf.mxu0
        %949 = vmatprep.mubr.f32.mxu0 0.0
        %v950 = vand.u32 %v263, 4294901760
        %v951 = vsub.f32 %v263, %v950
        %952 = vmatmul.mubr.f32.gmra.mxu0 %v951
        %v953 = vpop.f32.mrf.mxu0
        %v954 = vadd.f32 %v750, %v953
        %v955 = vpop.f32.mrf.mxu0
        %956 = vmatprep.mubr.f32.mxu0 0.0
        %v957 = vand.u32 %v264, 4294901760
        %v958 = vsub.f32 %v264, %v957
        %959 = vmatmul.mubr.f32.gmra.mxu0 %v958
        %v960 = vpop.f32.mrf.mxu0
        %v961 = vadd.f32 %v756, %v960
        %v962 = vpop.f32.mrf.mxu0
        %963 = vmatprep.mubr.f32.mxu0 0.0
        %v964 = vand.u32 %v265, 4294901760
        %v965 = vsub.f32 %v265, %v964
        %966 = vmatmul.mubr.f32.gmra.mxu0 %v965
        %v967 = vpop.f32.mrf.mxu0
        %v968 = vadd.f32 %v762, %v967
        %v969 = vpop.f32.mrf.mxu0
        %970 = vmatprep.mubr.f32.mxu0 0.0
        %v971 = vand.u32 %v266, 4294901760
        %v972 = vsub.f32 %v266, %v971
        %973 = vmatmul.mubr.f32.gmra.mxu0 %v972
        %v974 = vpop.f32.mrf.mxu0
        %v975 = vadd.f32 %v768, %v974
        %v976 = vpop.f32.mrf.mxu0
        %977 = vmatprep.mubr.f32.mxu0 0.0
        %v978 = vand.u32 %v267, 4294901760
        %v979 = vsub.f32 %v267, %v978
        %980 = vmatmul.mubr.f32.gmra.mxu0 %v979
        %v981 = vpop.f32.mrf.mxu0
        %v982 = vadd.f32 %v774, %v981
        %v983 = vpop.f32.mrf.mxu0
        %984 = vmatprep.mubr.f32.mxu0 0.0
        %v985 = vand.u32 %v268, 4294901760
        %v986 = vsub.f32 %v268, %v985
        %987 = vmatmul.mubr.f32.gmra.mxu0 %v986
        %v988 = vpop.f32.mrf.mxu0
        %v989 = vadd.f32 %v780, %v988
        %v990 = vpop.f32.mrf.mxu0
        %991 = vdwg.mxu0
        %992 = vmatprep.subr.mxu0 0.0
        %v993 = vand.u32 %v300, 4294901760
        %994 = vmatpush1.msra.mxu0 %v993
        %995 = vmatprep.subr.mxu0 0.0
        %v996 = vand.u32 %v299, 4294901760
        %997 = vmatpush1.msra.mxu0 %v996
        %998 = vmatprep.subr.mxu0 0.0
        %v999 = vand.u32 %v298, 4294901760
        %1000 = vmatpush1.msra.mxu0 %v999
        %1001 = vmatprep.subr.mxu0 0.0
        %v1002 = vand.u32 %v297, 4294901760
        %1003 = vmatpush1.msra.mxu0 %v1002
        %1004 = vmatprep.subr.mxu0 0.0
        %v1005 = vand.u32 %v296, 4294901760
        %1006 = vmatpush1.msra.mxu0 %v1005
        %1007 = vmatprep.subr.mxu0 0.0
        %v1008 = vand.u32 %v295, 4294901760
        %1009 = vmatpush1.msra.mxu0 %v1008
        %1010 = vmatprep.subr.mxu0 0.0
        %v1011 = vand.u32 %v294, 4294901760
        %1012 = vmatpush1.msra.mxu0 %v1011
        %1013 = vmatprep.subr.mxu0 0.0
        %v1014 = vand.u32 %v293, 4294901760
        %1015 = vmatpush1.msra.mxu0 %v1014
        %1016 = vmatprep.subr.mxu0 0.0
        %v1017 = vand.u32 %v292, 4294901760
        %1018 = vmatpush1.msra.mxu0 %v1017
        %1019 = vmatprep.subr.mxu0 0.0
        %v1020 = vand.u32 %v291, 4294901760
        %1021 = vmatpush1.msra.mxu0 %v1020
        %1022 = vmatprep.subr.mxu0 0.0
        %v1023 = vand.u32 %v290, 4294901760
        %1024 = vmatpush1.msra.mxu0 %v1023
        %1025 = vmatprep.subr.mxu0 0.0
        %v1026 = vand.u32 %v289, 4294901760
        %1027 = vmatpush1.msra.mxu0 %v1026
        %1028 = vmatprep.subr.mxu0 0.0
        %v1029 = vand.u32 %v288, 4294901760
        %1030 = vmatpush1.msra.mxu0 %v1029
        %1031 = vmatprep.subr.mxu0 0.0
        %v1032 = vand.u32 %v287, 4294901760
        %1033 = vmatpush1.msra.mxu0 %v1032
        %1034 = vmatprep.subr.mxu0 0.0
        %v1035 = vand.u32 %v286, 4294901760
        %1036 = vmatpush1.msra.mxu0 %v1035
        %1037 = vmatprep.subr.mxu0 0.0
        %v1038 = vand.u32 %v285, 4294901760
        %1039 = vmatpush1.msra.mxu0 %v1038
        %1040 = vmatprep.subr.mxu0 0.0
        %1041 = vmatpush2.msra.mxu0 0.0
        %1042 = vmatprep.subr.mxu0 0.0
        %1043 = vmatpush2.msra.mxu0 0.0
        %1044 = vmatprep.subr.mxu0 0.0
        %1045 = vmatpush2.msra.mxu0 0.0
        %1046 = vmatprep.subr.mxu0 0.0
        %1047 = vmatpush2.msra.mxu0 0.0
        %1048 = vmatprep.subr.mxu0 0.0
        %1049 = vmatpush2.msra.mxu0 0.0
        %1050 = vmatprep.subr.mxu0 0.0
        %1051 = vmatpush2.msra.mxu0 0.0
        %1052 = vmatprep.subr.mxu0 0.0
        %1053 = vmatpush2.msra.mxu0 0.0
        %1054 = vmatprep.subr.mxu0 0.0
        %1055 = vmatpush2.msra.mxu0 0.0
        %1056 = vmatprep.subr.mxu0 0.0
        %1057 = vmatpush2.msra.mxu0 0.0
        %1058 = vmatprep.subr.mxu0 0.0
        %1059 = vmatpush2.msra.mxu0 0.0
        %1060 = vmatprep.subr.mxu0 0.0
        %1061 = vmatpush2.msra.mxu0 0.0
        %1062 = vmatprep.subr.mxu0 0.0
        %1063 = vmatpush2.msra.mxu0 0.0
        %1064 = vmatprep.subr.mxu0 0.0
        %1065 = vmatpush2.msra.mxu0 0.0
        %1066 = vmatprep.subr.mxu0 0.0
        %1067 = vmatpush2.msra.mxu0 0.0
        %1068 = vmatprep.subr.mxu0 0.0
        %1069 = vmatpush2.msra.mxu0 0.0
        %1070 = vmatprep.subr.mxu0 0.0
        %1071 = vmatpush2.msra.mxu0 0.0
        %1072 = vmatprep.mubr.f32.mxu0 0.0
        %v1073 = vand.u32 %v253, 4294901760
        %v1074 = vsub.f32 %v253, %v1073
        %v1075 = vand.u32 %v1074, 4294901760
        %1076 = vmatmul.mubr.f32.gmra.mxu0 %v1075
        %v1077 = vpop.f32.mrf.mxu0
        %v1078 = vadd.f32 %v884, %v1077
        %v1079 = vpop.f32.mrf.mxu0
        %1080 = vmatprep.mubr.f32.mxu0 0.0
        %v1081 = vand.u32 %v254, 4294901760
        %v1082 = vsub.f32 %v254, %v1081
        %v1083 = vand.u32 %v1082, 4294901760
        %1084 = vmatmul.mubr.f32.gmra.mxu0 %v1083
        %v1085 = vpop.f32.mrf.mxu0
        %v1086 = vadd.f32 %v891, %v1085
        %v1087 = vpop.f32.mrf.mxu0
        %1088 = vmatprep.mubr.f32.mxu0 0.0
        %v1089 = vand.u32 %v255, 4294901760
        %v1090 = vsub.f32 %v255, %v1089
        %v1091 = vand.u32 %v1090, 4294901760
        %1092 = vmatmul.mubr.f32.gmra.mxu0 %v1091
        %v1093 = vpop.f32.mrf.mxu0
        %v1094 = vadd.f32 %v898, %v1093
        %v1095 = vpop.f32.mrf.mxu0
        %1096 = vmatprep.mubr.f32.mxu0 0.0
        %v1097 = vand.u32 %v256, 4294901760
        %v1098 = vsub.f32 %v256, %v1097
        %v1099 = vand.u32 %v1098, 4294901760
        %1100 = vmatmul.mubr.f32.gmra.mxu0 %v1099
        %v1101 = vpop.f32.mrf.mxu0
        %v1102 = vadd.f32 %v905, %v1101
        %v1103 = vpop.f32.mrf.mxu0
        %1104 = vmatprep.mubr.f32.mxu0 0.0
        %v1105 = vand.u32 %v257, 4294901760
        %v1106 = vsub.f32 %v257, %v1105
        %v1107 = vand.u32 %v1106, 4294901760
        %1108 = vmatmul.mubr.f32.gmra.mxu0 %v1107
        %v1109 = vpop.f32.mrf.mxu0
        %v1110 = vadd.f32 %v912, %v1109
        %v1111 = vpop.f32.mrf.mxu0
        %1112 = vmatprep.mubr.f32.mxu0 0.0
        %v1113 = vand.u32 %v258, 4294901760
        %v1114 = vsub.f32 %v258, %v1113
        %v1115 = vand.u32 %v1114, 4294901760
        %1116 = vmatmul.mubr.f32.gmra.mxu0 %v1115
        %v1117 = vpop.f32.mrf.mxu0
        %v1118 = vadd.f32 %v919, %v1117
        %v1119 = vpop.f32.mrf.mxu0
        %1120 = vmatprep.mubr.f32.mxu0 0.0
        %v1121 = vand.u32 %v259, 4294901760
        %v1122 = vsub.f32 %v259, %v1121
        %v1123 = vand.u32 %v1122, 4294901760
        %1124 = vmatmul.mubr.f32.gmra.mxu0 %v1123
        %v1125 = vpop.f32.mrf.mxu0
        %v1126 = vadd.f32 %v926, %v1125
        %v1127 = vpop.f32.mrf.mxu0
        %1128 = vmatprep.mubr.f32.mxu0 0.0
        %v1129 = vand.u32 %v260, 4294901760
        %v1130 = vsub.f32 %v260, %v1129
        %v1131 = vand.u32 %v1130, 4294901760
        %1132 = vmatmul.mubr.f32.gmra.mxu0 %v1131
        %v1133 = vpop.f32.mrf.mxu0
        %v1134 = vadd.f32 %v933, %v1133
        %v1135 = vpop.f32.mrf.mxu0
        %1136 = vmatprep.mubr.f32.mxu0 0.0
        %v1137 = vand.u32 %v261, 4294901760
        %v1138 = vsub.f32 %v261, %v1137
        %v1139 = vand.u32 %v1138, 4294901760
        %1140 = vmatmul.mubr.f32.gmra.mxu0 %v1139
        %v1141 = vpop.f32.mrf.mxu0
        %v1142 = vadd.f32 %v940, %v1141
        %v1143 = vpop.f32.mrf.mxu0
        %1144 = vmatprep.mubr.f32.mxu0 0.0
        %v1145 = vand.u32 %v262, 4294901760
        %v1146 = vsub.f32 %v262, %v1145
        %v1147 = vand.u32 %v1146, 4294901760
        %1148 = vmatmul.mubr.f32.gmra.mxu0 %v1147
        %v1149 = vpop.f32.mrf.mxu0
        %v1150 = vadd.f32 %v947, %v1149
        %v1151 = vpop.f32.mrf.mxu0
        %1152 = vmatprep.mubr.f32.mxu0 0.0
        %v1153 = vand.u32 %v263, 4294901760
        %v1154 = vsub.f32 %v263, %v1153
        %v1155 = vand.u32 %v1154, 4294901760
        %1156 = vmatmul.mubr.f32.gmra.mxu0 %v1155
        %v1157 = vpop.f32.mrf.mxu0
        %v1158 = vadd.f32 %v954, %v1157
        %v1159 = vpop.f32.mrf.mxu0
        %1160 = vmatprep.mubr.f32.mxu0 0.0
        %v1161 = vand.u32 %v264, 4294901760
        %v1162 = vsub.f32 %v264, %v1161
        %v1163 = vand.u32 %v1162, 4294901760
        %1164 = vmatmul.mubr.f32.gmra.mxu0 %v1163
        %v1165 = vpop.f32.mrf.mxu0
        %v1166 = vadd.f32 %v961, %v1165
        %v1167 = vpop.f32.mrf.mxu0
        %1168 = vmatprep.mubr.f32.mxu0 0.0
        %v1169 = vand.u32 %v265, 4294901760
        %v1170 = vsub.f32 %v265, %v1169
        %v1171 = vand.u32 %v1170, 4294901760
        %1172 = vmatmul.mubr.f32.gmra.mxu0 %v1171
        %v1173 = vpop.f32.mrf.mxu0
        %v1174 = vadd.f32 %v968, %v1173
        %v1175 = vpop.f32.mrf.mxu0
        %1176 = vmatprep.mubr.f32.mxu0 0.0
        %v1177 = vand.u32 %v266, 4294901760
        %v1178 = vsub.f32 %v266, %v1177
        %v1179 = vand.u32 %v1178, 4294901760
        %1180 = vmatmul.mubr.f32.gmra.mxu0 %v1179
        %v1181 = vpop.f32.mrf.mxu0
        %v1182 = vadd.f32 %v975, %v1181
        %v1183 = vpop.f32.mrf.mxu0
        %1184 = vmatprep.mubr.f32.mxu0 0.0
        %v1185 = vand.u32 %v267, 4294901760
        %v1186 = vsub.f32 %v267, %v1185
        %v1187 = vand.u32 %v1186, 4294901760
        %1188 = vmatmul.mubr.f32.gmra.mxu0 %v1187
        %v1189 = vpop.f32.mrf.mxu0
        %v1190 = vadd.f32 %v982, %v1189
        %v1191 = vpop.f32.mrf.mxu0
        %1192 = vmatprep.mubr.f32.mxu0 0.0
        %v1193 = vand.u32 %v268, 4294901760
        %v1194 = vsub.f32 %v268, %v1193
        %v1195 = vand.u32 %v1194, 4294901760
        %1196 = vmatmul.mubr.f32.gmra.mxu0 %v1195
        %v1197 = vpop.f32.mrf.mxu0
        %v1198 = vadd.f32 %v989, %v1197
        %v1199 = vpop.f32.mrf.mxu0
        %1200 = vdwg.mxu0
        %1201 = vmatprep.subr.mxu0 0.0
        %v1202 = vand.u32 %v300, 4294901760
        %v1203 = vsub.f32 %v300, %v1202
        %v1204 = vand.u32 %v1203, 4294901760
        %1205 = vmatpush1.msra.mxu0 %v1204
        %1206 = vmatprep.subr.mxu0 0.0
        %v1207 = vand.u32 %v299, 4294901760
        %v1208 = vsub.f32 %v299, %v1207
        %v1209 = vand.u32 %v1208, 4294901760
        %1210 = vmatpush1.msra.mxu0 %v1209
        %1211 = vmatprep.subr.mxu0 0.0
        %v1212 = vand.u32 %v298, 4294901760
        %v1213 = vsub.f32 %v298, %v1212
        %v1214 = vand.u32 %v1213, 4294901760
        %1215 = vmatpush1.msra.mxu0 %v1214
        %1216 = vmatprep.subr.mxu0 0.0
        %v1217 = vand.u32 %v297, 4294901760
        %v1218 = vsub.f32 %v297, %v1217
        %v1219 = vand.u32 %v1218, 4294901760
        %1220 = vmatpush1.msra.mxu0 %v1219
        %1221 = vmatprep.subr.mxu0 0.0
        %v1222 = vand.u32 %v296, 4294901760
        %v1223 = vsub.f32 %v296, %v1222
        %v1224 = vand.u32 %v1223, 4294901760
        %1225 = vmatpush1.msra.mxu0 %v1224
        %1226 = vmatprep.subr.mxu0 0.0
        %v1227 = vand.u32 %v295, 4294901760
        %v1228 = vsub.f32 %v295, %v1227
        %v1229 = vand.u32 %v1228, 4294901760
        %1230 = vmatpush1.msra.mxu0 %v1229
        %1231 = vmatprep.subr.mxu0 0.0
        %v1232 = vand.u32 %v294, 4294901760
        %v1233 = vsub.f32 %v294, %v1232
        %v1234 = vand.u32 %v1233, 4294901760
        %1235 = vmatpush1.msra.mxu0 %v1234
        %1236 = vmatprep.subr.mxu0 0.0
        %v1237 = vand.u32 %v293, 4294901760
        %v1238 = vsub.f32 %v293, %v1237
        %v1239 = vand.u32 %v1238, 4294901760
        %1240 = vmatpush1.msra.mxu0 %v1239
        %1241 = vmatprep.subr.mxu0 0.0
        %v1242 = vand.u32 %v292, 4294901760
        %v1243 = vsub.f32 %v292, %v1242
        %v1244 = vand.u32 %v1243, 4294901760
        %1245 = vmatpush1.msra.mxu0 %v1244
        %1246 = vmatprep.subr.mxu0 0.0
        %v1247 = vand.u32 %v291, 4294901760
        %v1248 = vsub.f32 %v291, %v1247
        %v1249 = vand.u32 %v1248, 4294901760
        %1250 = vmatpush1.msra.mxu0 %v1249
        %1251 = vmatprep.subr.mxu0 0.0
        %v1252 = vand.u32 %v290, 4294901760
        %v1253 = vsub.f32 %v290, %v1252
        %v1254 = vand.u32 %v1253, 4294901760
        %1255 = vmatpush1.msra.mxu0 %v1254
        %1256 = vmatprep.subr.mxu0 0.0
        %v1257 = vand.u32 %v289, 4294901760
        %v1258 = vsub.f32 %v289, %v1257
        %v1259 = vand.u32 %v1258, 4294901760
        %1260 = vmatpush1.msra.mxu0 %v1259
        %1261 = vmatprep.subr.mxu0 0.0
        %v1262 = vand.u32 %v288, 4294901760
        %v1263 = vsub.f32 %v288, %v1262
        %v1264 = vand.u32 %v1263, 4294901760
        %1265 = vmatpush1.msra.mxu0 %v1264
        %1266 = vmatprep.subr.mxu0 0.0
        %v1267 = vand.u32 %v287, 4294901760
        %v1268 = vsub.f32 %v287, %v1267
        %v1269 = vand.u32 %v1268, 4294901760
        %1270 = vmatpush1.msra.mxu0 %v1269
        %1271 = vmatprep.subr.mxu0 0.0
        %v1272 = vand.u32 %v286, 4294901760
        %v1273 = vsub.f32 %v286, %v1272
        %v1274 = vand.u32 %v1273, 4294901760
        %1275 = vmatpush1.msra.mxu0 %v1274
        %1276 = vmatprep.subr.mxu0 0.0
        %v1277 = vand.u32 %v285, 4294901760
        %v1278 = vsub.f32 %v285, %v1277
        %v1279 = vand.u32 %v1278, 4294901760
        %1280 = vmatpush1.msra.mxu0 %v1279
        %1281 = vmatprep.subr.mxu0 0.0
        %1282 = vmatpush2.msra.mxu0 0.0
        %1283 = vmatprep.subr.mxu0 0.0
        %1284 = vmatpush2.msra.mxu0 0.0
        %1285 = vmatprep.subr.mxu0 0.0
        %1286 = vmatpush2.msra.mxu0 0.0
        %1287 = vmatprep.subr.mxu0 0.0
        %1288 = vmatpush2.msra.mxu0 0.0
        %1289 = vmatprep.subr.mxu0 0.0
        %1290 = vmatpush2.msra.mxu0 0.0
        %1291 = vmatprep.subr.mxu0 0.0
        %1292 = vmatpush2.msra.mxu0 0.0
        %1293 = vmatprep.subr.mxu0 0.0
        %1294 = vmatpush2.msra.mxu0 0.0
        %1295 = vmatprep.subr.mxu0 0.0
        %1296 = vmatpush2.msra.mxu0 0.0
        %1297 = vmatprep.subr.mxu0 0.0
        %1298 = vmatpush2.msra.mxu0 0.0
        %1299 = vmatprep.subr.mxu0 0.0
        %1300 = vmatpush2.msra.mxu0 0.0
        %1301 = vmatprep.subr.mxu0 0.0
        %1302 = vmatpush2.msra.mxu0 0.0
        %1303 = vmatprep.subr.mxu0 0.0
        %1304 = vmatpush2.msra.mxu0 0.0
        %1305 = vmatprep.subr.mxu0 0.0
        %1306 = vmatpush2.msra.mxu0 0.0
        %1307 = vmatprep.subr.mxu0 0.0
        %1308 = vmatpush2.msra.mxu0 0.0
        %1309 = vmatprep.subr.mxu0 0.0
        %1310 = vmatpush2.msra.mxu0 0.0
        %1311 = vmatprep.subr.mxu0 0.0
        %1312 = vmatpush2.msra.mxu0 0.0
        %1313 = vmatprep.mubr.f32.mxu0 0.0
        %v1314 = vand.u32 %v253, 4294901760
        %1315 = vmatmul.mubr.f32.gmra.mxu0 %v1314
        %v1316 = vpop.f32.mrf.mxu0
        %v1317 = vadd.f32 %v1078, %v1316
        %v1318 = vpop.f32.mrf.mxu0
        %1319 = vmatprep.mubr.f32.mxu0 0.0
        %v1320 = vand.u32 %v254, 4294901760
        %1321 = vmatmul.mubr.f32.gmra.mxu0 %v1320
        %v1322 = vpop.f32.mrf.mxu0
        %v1323 = vadd.f32 %v1086, %v1322
        %v1324 = vpop.f32.mrf.mxu0
        %1325 = vmatprep.mubr.f32.mxu0 0.0
        %v1326 = vand.u32 %v255, 4294901760
        %1327 = vmatmul.mubr.f32.gmra.mxu0 %v1326
        %v1328 = vpop.f32.mrf.mxu0
        %v1329 = vadd.f32 %v1094, %v1328
        %v1330 = vpop.f32.mrf.mxu0
        %1331 = vmatprep.mubr.f32.mxu0 0.0
        %v1332 = vand.u32 %v256, 4294901760
        %1333 = vmatmul.mubr.f32.gmra.mxu0 %v1332
        %v1334 = vpop.f32.mrf.mxu0
        %v1335 = vadd.f32 %v1102, %v1334
        %v1336 = vpop.f32.mrf.mxu0
        %1337 = vmatprep.mubr.f32.mxu0 0.0
        %v1338 = vand.u32 %v257, 4294901760
        %1339 = vmatmul.mubr.f32.gmra.mxu0 %v1338
        %v1340 = vpop.f32.mrf.mxu0
        %v1341 = vadd.f32 %v1110, %v1340
        %v1342 = vpop.f32.mrf.mxu0
        %1343 = vmatprep.mubr.f32.mxu0 0.0
        %v1344 = vand.u32 %v258, 4294901760
        %1345 = vmatmul.mubr.f32.gmra.mxu0 %v1344
        %v1346 = vpop.f32.mrf.mxu0
        %v1347 = vadd.f32 %v1118, %v1346
        %v1348 = vpop.f32.mrf.mxu0
        %1349 = vmatprep.mubr.f32.mxu0 0.0
        %v1350 = vand.u32 %v259, 4294901760
        %1351 = vmatmul.mubr.f32.gmra.mxu0 %v1350
        %v1352 = vpop.f32.mrf.mxu0
        %v1353 = vadd.f32 %v1126, %v1352
        %v1354 = vpop.f32.mrf.mxu0
        %1355 = vmatprep.mubr.f32.mxu0 0.0
        %v1356 = vand.u32 %v260, 4294901760
        %1357 = vmatmul.mubr.f32.gmra.mxu0 %v1356
        %v1358 = vpop.f32.mrf.mxu0
        %v1359 = vadd.f32 %v1134, %v1358
        %v1360 = vpop.f32.mrf.mxu0
        %1361 = vmatprep.mubr.f32.mxu0 0.0
        %v1362 = vand.u32 %v261, 4294901760
        %1363 = vmatmul.mubr.f32.gmra.mxu0 %v1362
        %v1364 = vpop.f32.mrf.mxu0
        %v1365 = vadd.f32 %v1142, %v1364
        %v1366 = vpop.f32.mrf.mxu0
        %1367 = vmatprep.mubr.f32.mxu0 0.0
        %v1368 = vand.u32 %v262, 4294901760
        %1369 = vmatmul.mubr.f32.gmra.mxu0 %v1368
        %v1370 = vpop.f32.mrf.mxu0
        %v1371 = vadd.f32 %v1150, %v1370
        %v1372 = vpop.f32.mrf.mxu0
        %1373 = vmatprep.mubr.f32.mxu0 0.0
        %v1374 = vand.u32 %v263, 4294901760
        %1375 = vmatmul.mubr.f32.gmra.mxu0 %v1374
        %v1376 = vpop.f32.mrf.mxu0
        %v1377 = vadd.f32 %v1158, %v1376
        %v1378 = vpop.f32.mrf.mxu0
        %1379 = vmatprep.mubr.f32.mxu0 0.0
        %v1380 = vand.u32 %v264, 4294901760
        %1381 = vmatmul.mubr.f32.gmra.mxu0 %v1380
        %v1382 = vpop.f32.mrf.mxu0
        %v1383 = vadd.f32 %v1166, %v1382
        %v1384 = vpop.f32.mrf.mxu0
        %1385 = vmatprep.mubr.f32.mxu0 0.0
        %v1386 = vand.u32 %v265, 4294901760
        %1387 = vmatmul.mubr.f32.gmra.mxu0 %v1386
        %v1388 = vpop.f32.mrf.mxu0
        %v1389 = vadd.f32 %v1174, %v1388
        %v1390 = vpop.f32.mrf.mxu0
        %1391 = vmatprep.mubr.f32.mxu0 0.0
        %v1392 = vand.u32 %v266, 4294901760
        %1393 = vmatmul.mubr.f32.gmra.mxu0 %v1392
        %v1394 = vpop.f32.mrf.mxu0
        %v1395 = vadd.f32 %v1182, %v1394
        %v1396 = vpop.f32.mrf.mxu0
        %1397 = vmatprep.mubr.f32.mxu0 0.0
        %v1398 = vand.u32 %v267, 4294901760
        %1399 = vmatmul.mubr.f32.gmra.mxu0 %v1398
        %v1400 = vpop.f32.mrf.mxu0
        %v1401 = vadd.f32 %v1190, %v1400
        %v1402 = vpop.f32.mrf.mxu0
        %1403 = vmatprep.mubr.f32.mxu0 0.0
        %v1404 = vand.u32 %v268, 4294901760
        %1405 = vmatmul.mubr.f32.gmra.mxu0 %v1404
        %v1406 = vpop.f32.mrf.mxu0
        %v1407 = vadd.f32 %v1198, %v1406
        %v1408 = vpop.f32.mrf.mxu0
        %1409 = vdwg.mxu0
        %1410 = vmatprep.subr.mxu0 0.0
        %v1411 = vand.u32 %v300, 4294901760
        %1412 = vmatpush1.msra.mxu0 %v1411
        %1413 = vmatprep.subr.mxu0 0.0
        %v1414 = vand.u32 %v299, 4294901760
        %1415 = vmatpush1.msra.mxu0 %v1414
        %1416 = vmatprep.subr.mxu0 0.0
        %v1417 = vand.u32 %v298, 4294901760
        %1418 = vmatpush1.msra.mxu0 %v1417
        %1419 = vmatprep.subr.mxu0 0.0
        %v1420 = vand.u32 %v297, 4294901760
        %1421 = vmatpush1.msra.mxu0 %v1420
        %1422 = vmatprep.subr.mxu0 0.0
        %v1423 = vand.u32 %v296, 4294901760
        %1424 = vmatpush1.msra.mxu0 %v1423
        %1425 = vmatprep.subr.mxu0 0.0
        %v1426 = vand.u32 %v295, 4294901760
        %1427 = vmatpush1.msra.mxu0 %v1426
        %1428 = vmatprep.subr.mxu0 0.0
        %v1429 = vand.u32 %v294, 4294901760
        %1430 = vmatpush1.msra.mxu0 %v1429
        %1431 = vmatprep.subr.mxu0 0.0
        %v1432 = vand.u32 %v293, 4294901760
        %1433 = vmatpush1.msra.mxu0 %v1432
        %1434 = vmatprep.subr.mxu0 0.0
        %v1435 = vand.u32 %v292, 4294901760
        %1436 = vmatpush1.msra.mxu0 %v1435
        %1437 = vmatprep.subr.mxu0 0.0
        %v1438 = vand.u32 %v291, 4294901760
        %1439 = vmatpush1.msra.mxu0 %v1438
        %1440 = vmatprep.subr.mxu0 0.0
        %v1441 = vand.u32 %v290, 4294901760
        %1442 = vmatpush1.msra.mxu0 %v1441
        %1443 = vmatprep.subr.mxu0 0.0
        %v1444 = vand.u32 %v289, 4294901760
        %1445 = vmatpush1.msra.mxu0 %v1444
        %1446 = vmatprep.subr.mxu0 0.0
        %v1447 = vand.u32 %v288, 4294901760
        %1448 = vmatpush1.msra.mxu0 %v1447
        %1449 = vmatprep.subr.mxu0 0.0
        %v1450 = vand.u32 %v287, 4294901760
        %1451 = vmatpush1.msra.mxu0 %v1450
        %1452 = vmatprep.subr.mxu0 0.0
        %v1453 = vand.u32 %v286, 4294901760
        %1454 = vmatpush1.msra.mxu0 %v1453
        %1455 = vmatprep.subr.mxu0 0.0
        %v1456 = vand.u32 %v285, 4294901760
        %1457 = vmatpush1.msra.mxu0 %v1456
        %1458 = vmatprep.subr.mxu0 0.0
        %1459 = vmatpush2.msra.mxu0 0.0
        %1460 = vmatprep.subr.mxu0 0.0
        %1461 = vmatpush2.msra.mxu0 0.0
        %1462 = vmatprep.subr.mxu0 0.0
        %1463 = vmatpush2.msra.mxu0 0.0
        %1464 = vmatprep.subr.mxu0 0.0
        %1465 = vmatpush2.msra.mxu0 0.0
        %1466 = vmatprep.subr.mxu0 0.0
        %1467 = vmatpush2.msra.mxu0 0.0
        %1468 = vmatprep.subr.mxu0 0.0
        %1469 = vmatpush2.msra.mxu0 0.0
        %1470 = vmatprep.subr.mxu0 0.0
        %1471 = vmatpush2.msra.mxu0 0.0
        %1472 = vmatprep.subr.mxu0 0.0
        %1473 = vmatpush2.msra.mxu0 0.0
        %1474 = vmatprep.subr.mxu0 0.0
        %1475 = vmatpush2.msra.mxu0 0.0
        %1476 = vmatprep.subr.mxu0 0.0
        %1477 = vmatpush2.msra.mxu0 0.0
        %1478 = vmatprep.subr.mxu0 0.0
        %1479 = vmatpush2.msra.mxu0 0.0
        %1480 = vmatprep.subr.mxu0 0.0
        %1481 = vmatpush2.msra.mxu0 0.0
        %1482 = vmatprep.subr.mxu0 0.0
        %1483 = vmatpush2.msra.mxu0 0.0
        %1484 = vmatprep.subr.mxu0 0.0
        %1485 = vmatpush2.msra.mxu0 0.0
        %1486 = vmatprep.subr.mxu0 0.0
        %1487 = vmatpush2.msra.mxu0 0.0
        %1488 = vmatprep.subr.mxu0 0.0
        %1489 = vmatpush2.msra.mxu0 0.0
        %1490 = vmatprep.mubr.f32.mxu0 0.0
        %v1491 = vand.u32 %v253, 4294901760
        %1492 = vmatmul.mubr.f32.gmra.mxu0 %v1491
        %v1493 = vpop.f32.mrf.mxu0
        %v1494 = vadd.f32 %v1317, %v1493
        %v1495 = vpop.f32.mrf.mxu0
        %1496 = vmatprep.mubr.f32.mxu0 0.0
        %v1497 = vand.u32 %v254, 4294901760
        %1498 = vmatmul.mubr.f32.gmra.mxu0 %v1497
        %v1499 = vpop.f32.mrf.mxu0
        %v1500 = vadd.f32 %v1323, %v1499
        %v1501 = vpop.f32.mrf.mxu0
        %1502 = vmatprep.mubr.f32.mxu0 0.0
        %v1503 = vand.u32 %v255, 4294901760
        %1504 = vmatmul.mubr.f32.gmra.mxu0 %v1503
        %v1505 = vpop.f32.mrf.mxu0
        %v1506 = vadd.f32 %v1329, %v1505
        %v1507 = vpop.f32.mrf.mxu0
        %1508 = vmatprep.mubr.f32.mxu0 0.0
        %v1509 = vand.u32 %v256, 4294901760
        %1510 = vmatmul.mubr.f32.gmra.mxu0 %v1509
        %v1511 = vpop.f32.mrf.mxu0
        %v1512 = vadd.f32 %v1335, %v1511
        %v1513 = vpop.f32.mrf.mxu0
        %1514 = vmatprep.mubr.f32.mxu0 0.0
        %v1515 = vand.u32 %v257, 4294901760
        %1516 = vmatmul.mubr.f32.gmra.mxu0 %v1515
        %v1517 = vpop.f32.mrf.mxu0
        %v1518 = vadd.f32 %v1341, %v1517
        %v1519 = vpop.f32.mrf.mxu0
        %1520 = vmatprep.mubr.f32.mxu0 0.0
        %v1521 = vand.u32 %v258, 4294901760
        %1522 = vmatmul.mubr.f32.gmra.mxu0 %v1521
        %v1523 = vpop.f32.mrf.mxu0
        %v1524 = vadd.f32 %v1347, %v1523
        %v1525 = vpop.f32.mrf.mxu0
        %1526 = vmatprep.mubr.f32.mxu0 0.0
        %v1527 = vand.u32 %v259, 4294901760
        %1528 = vmatmul.mubr.f32.gmra.mxu0 %v1527
        %v1529 = vpop.f32.mrf.mxu0
        %v1530 = vadd.f32 %v1353, %v1529
        %v1531 = vpop.f32.mrf.mxu0
        %1532 = vmatprep.mubr.f32.mxu0 0.0
        %v1533 = vand.u32 %v260, 4294901760
        %1534 = vmatmul.mubr.f32.gmra.mxu0 %v1533
        %v1535 = vpop.f32.mrf.mxu0
        %v1536 = vadd.f32 %v1359, %v1535
        %v1537 = vpop.f32.mrf.mxu0
        %1538 = vmatprep.mubr.f32.mxu0 0.0
        %v1539 = vand.u32 %v261, 4294901760
        %1540 = vmatmul.mubr.f32.gmra.mxu0 %v1539
        %v1541 = vpop.f32.mrf.mxu0
        %v1542 = vadd.f32 %v1365, %v1541
        %v1543 = vpop.f32.mrf.mxu0
        %1544 = vmatprep.mubr.f32.mxu0 0.0
        %v1545 = vand.u32 %v262, 4294901760
        %1546 = vmatmul.mubr.f32.gmra.mxu0 %v1545
        %v1547 = vpop.f32.mrf.mxu0
        %v1548 = vadd.f32 %v1371, %v1547
        %v1549 = vpop.f32.mrf.mxu0
        %1550 = vmatprep.mubr.f32.mxu0 0.0
        %v1551 = vand.u32 %v263, 4294901760
        %1552 = vmatmul.mubr.f32.gmra.mxu0 %v1551
        %v1553 = vpop.f32.mrf.mxu0
        %v1554 = vadd.f32 %v1377, %v1553
        %v1555 = vpop.f32.mrf.mxu0
        %1556 = vmatprep.mubr.f32.mxu0 0.0
        %v1557 = vand.u32 %v264, 4294901760
        %1558 = vmatmul.mubr.f32.gmra.mxu0 %v1557
        %v1559 = vpop.f32.mrf.mxu0
        %v1560 = vadd.f32 %v1383, %v1559
        %v1561 = vpop.f32.mrf.mxu0
        %1562 = vmatprep.mubr.f32.mxu0 0.0
        %v1563 = vand.u32 %v265, 4294901760
        %1564 = vmatmul.mubr.f32.gmra.mxu0 %v1563
        %v1565 = vpop.f32.mrf.mxu0
        %v1566 = vadd.f32 %v1389, %v1565
        %v1567 = vpop.f32.mrf.mxu0
        %1568 = vmatprep.mubr.f32.mxu0 0.0
        %v1569 = vand.u32 %v266, 4294901760
        %1570 = vmatmul.mubr.f32.gmra.mxu0 %v1569
        %v1571 = vpop.f32.mrf.mxu0
        %v1572 = vadd.f32 %v1395, %v1571
        %v1573 = vpop.f32.mrf.mxu0
        %1574 = vmatprep.mubr.f32.mxu0 0.0
        %v1575 = vand.u32 %v267, 4294901760
        %1576 = vmatmul.mubr.f32.gmra.mxu0 %v1575
        %v1577 = vpop.f32.mrf.mxu0
        %v1578 = vadd.f32 %v1401, %v1577
        %v1579 = vpop.f32.mrf.mxu0
        %1580 = vmatprep.mubr.f32.mxu0 0.0
        %v1581 = vand.u32 %v268, 4294901760
        %1582 = vmatmul.mubr.f32.gmra.mxu0 %v1581
        %v1583 = vpop.f32.mrf.mxu0
        %v1584 = vadd.f32 %v1407, %v1583
        %v1585 = vpop.f32.mrf.mxu0
        %1586 = vdwg.mxu0
        %v1587 = vadd.f32 %v269, %v1494
        %v1588 = vadd.f32 %v270, %v1500
        %v1589 = vadd.f32 %v271, %v1506
        %v1590 = vadd.f32 %v272, %v1512
        %v1591 = vadd.f32 %v273, %v1518
        %v1592 = vadd.f32 %v274, %v1524
        %v1593 = vadd.f32 %v275, %v1530
        %v1594 = vadd.f32 %v276, %v1536
        %v1595 = vadd.f32 %v277, %v1542
        %v1596 = vadd.f32 %v278, %v1548
        %v1597 = vadd.f32 %v279, %v1554
        %v1598 = vadd.f32 %v280, %v1560
        %v1599 = vadd.f32 %v281, %v1566
        %v1600 = vadd.f32 %v282, %v1572
        %v1601 = vadd.f32 %v283, %v1578
        %v1602 = vadd.f32 %v284, %v1584
        %1603 = vst [vmem:[#allocation2] sm:$0xff] %v1587
        %1604 = vst [vmem:[#allocation2 + $0x8] sm:$0xff] %v1588
        %1605 = vst [vmem:[#allocation2 + $0x10] sm:$0xff] %v1589
        %1606 = vst [vmem:[#allocation2 + $0x18] sm:$0xff] %v1590
        %1607 = vst [vmem:[#allocation2 + $0x20] sm:$0xff] %v1591
        %1608 = vst [vmem:[#allocation2 + $0x28] sm:$0xff] %v1592
        %1609 = vst [vmem:[#allocation2 + $0x30] sm:$0xff] %v1593
        %1610 = vst [vmem:[#allocation2 + $0x38] sm:$0xff] %v1594
        %1611 = vst [vmem:[#allocation2 + $0x40] sm:$0xff] %v1595
        %1612 = vst [vmem:[#allocation2 + $0x48] sm:$0xff] %v1596
        %1613 = vst [vmem:[#allocation2 + $0x50] sm:$0xff] %v1597
        %1614 = vst [vmem:[#allocation2 + $0x58] sm:$0xff] %v1598
        %1615 = vst [vmem:[#allocation2 + $0x60] sm:$0xff] %v1599
        %1616 = vst [vmem:[#allocation2 + $0x68] sm:$0xff] %v1600
        %1617 = vst [vmem:[#allocation2 + $0x70] sm:$0xff] %v1601
        %1618 = vst [vmem:[#allocation2 + $0x78] sm:$0xff] %v1602
        %p1619 = scmp.eq.s32.totalorder %s29, 1
        // Predicated region
        $region41: #{tpu_custom_call.1} parent=27 // pred_check
          %p1620 = pneg %p1619
        $region42: #{tpu_custom_call.1} parent=27 // pred_check_branch
          %1622 = sbr.rel (%p1620) target = $region44
        $region43: #{tpu_custom_call.1} parent=27 // pred_region
          %v1623 = vld [vmem:[#allocation2] sm:$0xff]
          %v1624 = vld [vmem:[#allocation2 + $0x8] sm:$0xff]
          %v1625 = vld [vmem:[#allocation2 + $0x10] sm:$0xff]
          %v1626 = vld [vmem:[#allocation2 + $0x18] sm:$0xff]
          %v1627 = vld [vmem:[#allocation2 + $0x20] sm:$0xff]
          %v1628 = vld [vmem:[#allocation2 + $0x28] sm:$0xff]
          %v1629 = vld [vmem:[#allocation2 + $0x30] sm:$0xff]
          %v1630 = vld [vmem:[#allocation2 + $0x38] sm:$0xff]
          %v1631 = vld [vmem:[#allocation2 + $0x40] sm:$0xff]
          %v1632 = vld [vmem:[#allocation2 + $0x48] sm:$0xff]
          %v1633 = vld [vmem:[#allocation2 + $0x50] sm:$0xff]
          %v1634 = vld [vmem:[#allocation2 + $0x58] sm:$0xff]
          %v1635 = vld [vmem:[#allocation2 + $0x60] sm:$0xff]
          %v1636 = vld [vmem:[#allocation2 + $0x68] sm:$0xff]
          %v1637 = vld [vmem:[#allocation2 + $0x70] sm:$0xff]
          %v1638 = vld [vmem:[#allocation2 + $0x78] sm:$0xff]
          %1639 = vst [vmem:[%s229] sm:$0xff] %v1623
          %1640 = vst [vmem:[%s229 + $0x8] sm:$0xff] %v1624
          %1641 = vst [vmem:[%s229 + $0x10] sm:$0xff] %v1625
          %1642 = vst [vmem:[%s229 + $0x18] sm:$0xff] %v1626
          %1643 = vst [vmem:[%s229 + $0x20] sm:$0xff] %v1627
          %1644 = vst [vmem:[%s229 + $0x28] sm:$0xff] %v1628
          %1645 = vst [vmem:[%s229 + $0x30] sm:$0xff] %v1629
          %1646 = vst [vmem:[%s229 + $0x38] sm:$0xff] %v1630
          %1647 = vst [vmem:[%s229 + $0x40] sm:$0xff] %v1631
          %1648 = vst [vmem:[%s229 + $0x48] sm:$0xff] %v1632
          %1649 = vst [vmem:[%s229 + $0x50] sm:$0xff] %v1633
          %1650 = vst [vmem:[%s229 + $0x58] sm:$0xff] %v1634
          %1651 = vst [vmem:[%s229 + $0x60] sm:$0xff] %v1635
          %1652 = vst [vmem:[%s229 + $0x68] sm:$0xff] %v1636
          %1653 = vst [vmem:[%s229 + $0x70] sm:$0xff] %v1637
          %1654 = vst [vmem:[%s229 + $0x78] sm:$0xff] %v1638
        $region44: #{tpu_custom_call.1} parent=27 // pred_fallthru
          _
        %s1655 = sand.u32 %s107, 1
        %s1656 = scalar_lea.sflag [#allocation5], %s1655
        %s1657 = sand.u32 %s107, 1
        %s1658 = smul.addr %s1657, 128
        %s1659 = scalar_lea.vmem [#allocation8], %s1658
        // Predicated region
        $region45: #{tpu_custom_call.1} parent=27 // pred_check
          %p1660 = pneg %p117
        $region46: #{tpu_custom_call.1} parent=27 // pred_check_branch
          %1662 = sbr.rel (%p1660) target = $region48
        $region47: #{tpu_custom_call.1} parent=27 // pred_region
          %s1663 = smul.u32 16, %s27
          %s1665 = ssub.s32 2048, 2048
          %1666 = vsyncadd %s1656, %s1665
          %s1667 = sadd.s32 %s28, %s1663
          %s1668 = smul.addr %s1667, 128
          %s1669 = scalar_lea.hbm %s2, %s1668
          %s1670 = sshll.u32 %s1659, 4
          %s1671 = int_to_ptr.vmem [resolvable:$true] %s1670
          %1676 = dma.vmem_to_hbm [thread:$0]  %s1671, 2048, %s1669, %s1656, 128, 128, 8
        $region48: #{tpu_custom_call.1} parent=27 // pred_fallthru
          _
      $region28: #{tpu_custom_call.1} parent=5 // pred_fallthru
        _
      %p1677 = scmp.le.s32.totalorder 2, %s17
      // Predicated region
      $region49: #{tpu_custom_call.1} parent=5 // pred_check
        %p1678 = pneg %p1677
      $region50: #{tpu_custom_call.1} parent=5 // pred_check_branch
        %1680 = sbr.rel (%p1678) target = $region52
      $region51: #{tpu_custom_call.1} parent=5 // pred_region
        %s1681 = ssub.s32 %s17, 2
        // Predicated region
        $region53: #{tpu_custom_call.1} parent=51 // pred_check
          %p1682 = pneg %p123
        $region54: #{tpu_custom_call.1} parent=51 // pred_check_branch
          %1684 = sbr.rel (%p1682) target = $region56
        $region55: #{tpu_custom_call.1} parent=51 // pred_region
          %s1685 = sand.u32 %s108, 1
          %s1686 = scalar_lea.sflag [#allocation5], %s1685
          %s1687 = sand.u32 %s108, 1
          %s1688 = smul.addr %s1687, 128
          %s1689 = scalar_lea.vmem [#allocation8], %s1688
          %1690 = dma.done %s1686, 2048
        $region56: #{tpu_custom_call.1} parent=51 // pred_fallthru
          _
      $region52: #{tpu_custom_call.1} parent=5 // pred_fallthru
        _
    $region6: #{tpu_custom_call.1} parent=1 // loop_footer
      %s21 = sadd.s32 1, %s17
    $region7: #{tpu_custom_call.1} parent=1 // loop_footer_branch
      %16 = sbr.rel target = $region3
    $region8: #{tpu_custom_call.1} parent=1 // loop_exit
      _
    %1691 = vsyncpa [#allocation4], 1
    %s1692 = scalar_lea.sflag [#allocation4], 1
    %1693 = vsyncpa %s1692, 1
    %1694 = vsyncpa [#allocation7], 1
    %s1695 = scalar_lea.sflag [#allocation7], 1
    %1696 = vsyncpa %s1695, 1
    %1697 = vsyncpa [#allocation5], 1
    %s1698 = scalar_lea.sflag [#allocation5], 1
    %1699 = vsyncpa %s1698, 1

</llo_original>
